<compile_context>
chip_gen: v6e
topology: v6e:2x2x1
jax: 0.10.0
libtpu: 0.0.40
codegen_flags: <defaults>
</compile_context>

<pallas_src>
import jax
import jax.numpy as jnp
from jax.experimental import pallas as pl
from jax.experimental.pallas import tpu as pltpu

# Logical (PyTorch) dims
D_IN, D_H1, D_H2, D_OUT = 784, 196, 98, 10
# Lane-aligned (zero-padded) dims used inside the kernel
P_IN, P_H1, P_H2, P_OUT = 896, 256, 128, 128


def _round_up(x, m):
    return ((x + m - 1) // m) * m


def _pad_to(a, shape):
    pads = [(0, t - s) for s, t in zip(a.shape, shape)]
    return jnp.pad(a, pads)


def mlp_kernel(x_ref, w1_ref, b1_ref, w2_ref, b2_ref, w3_ref, b3_ref, o_ref):
    # One batch tile per grid step; weights/biases are resident across steps.
    x = x_ref[...].astype(jnp.bfloat16)

    h1 = jnp.dot(x, w1_ref[...], preferred_element_type=jnp.float32) + b1_ref[...]
    h1 = jnp.maximum(h1, 0.0)

    h2 = jnp.dot(h1.astype(jnp.bfloat16), w2_ref[...],
                 preferred_element_type=jnp.float32) + b2_ref[...]
    h2 = jnp.maximum(h2, 0.0)

    out = jnp.dot(h2.astype(jnp.bfloat16), w3_ref[...],
                  preferred_element_type=jnp.float32) + b3_ref[...]
    o_ref[...] = out.astype(o_ref.dtype)


def mlp_forward(x, params, *, tile_m=256):
    """x: (B, 1, 28, 28) or (B, 784). Returns (B, 10) float32."""
    w1, b1, w2, b2, w3, b3 = params
    B = x.shape[0]
    x2d = x.reshape(B, -1).astype(jnp.float32)  # same as torch x.view(x.size(0), -1)
    assert x2d.shape[1] == D_IN, f"expected {D_IN} features, got {x2d.shape[1]}"

    # Batch tile: multiple of 128 rows (full MXU occupancy), pad B up to it.
    tm = min(tile_m, _round_up(B, 128))
    Bp = _round_up(B, tm)
    grid = (Bp // tm,)

    # Zero-pad input columns (K) and all weights/biases to lane-aligned shapes.
    xp = _pad_to(x2d, (Bp, P_IN))
    w1p = _pad_to(w1, (P_IN, P_H1)).astype(jnp.bfloat16)
    w2p = _pad_to(w2, (P_H1, P_H2)).astype(jnp.bfloat16)
    w3p = _pad_to(w3, (P_H2, P_OUT)).astype(jnp.bfloat16)
    b1p = _pad_to(b1.reshape(1, -1), (1, P_H1)).astype(jnp.float32)
    b2p = _pad_to(b2.reshape(1, -1), (1, P_H2)).astype(jnp.float32)
    b3p = _pad_to(b3.reshape(1, -1), (1, P_OUT)).astype(jnp.float32)

    def const(shape):
        return pl.BlockSpec(shape, lambda i: (0,) * len(shape))

    flops = 2 * B * (D_IN * D_H1 + D_H1 * D_H2 + D_H2 * D_OUT)
    weight_bytes = (2 * (P_IN * P_H1 + P_H1 * P_H2 + P_H2 * P_OUT)
                    + 4 * (P_H1 + P_H2 + P_OUT))
    bytes_accessed = B * D_IN * 4 + weight_bytes + B * D_OUT * 4

    out_padded = pl.pallas_call(
        mlp_kernel,
        out_shape=jax.ShapeDtypeStruct((Bp, P_OUT), jnp.float32),
        grid=grid,
        in_specs=[
            pl.BlockSpec((tm, P_IN), lambda i: (i, 0)),   # streamed input tile
            const((P_IN, P_H1)), const((1, P_H1)),        # resident W1, b1
            const((P_H1, P_H2)), const((1, P_H2)),        # resident W2, b2
            const((P_H2, P_OUT)), const((1, P_OUT)),      # resident W3, b3
        ],
        out_specs=pl.BlockSpec((tm, P_OUT), lambda i: (i, 0)),
        compiler_params=pltpu.CompilerParams(
            dimension_semantics=("parallel",),
            vmem_limit_bytes=32 << 20,
        ),
        cost_estimate=pl.CostEstimate(
            flops=flops, transcendentals=0, bytes_accessed=bytes_accessed),
    )(xp, w1p, b1p, w2p, b2p, w3p, b3p)

    return out_padded[:B, :D_OUT]


def init_params(key):
    """Deterministic init mimicking nn.Linear's U(-1/sqrt(fan_in), 1/sqrt(fan_in)).

    Weights stored as (in_features, out_features) — already transposed relative
    to PyTorch's (out, in), so the kernel computes x @ W + b (same math as
    x @ W.T + b with PyTorch's layout).
    """
    dims = [(D_IN, D_H1), (D_H1, D_H2), (D_H2, D_OUT)]
    params = []
    for fan_in, fan_out in dims:
        key, kw, kb = jax.random.split(key, 3)
        bound = 1.0 / jnp.sqrt(fan_in)
        w = jax.random.uniform(kw, (fan_in, fan_out), jnp.float32, -bound, bound)
        b = jax.random.uniform(kb, (fan_out,), jnp.float32, -bound, bound)
        params.extend([w, b])
    return tuple(params)


def mlp_reference(x, params):
    """Pure-JAX reference matching the kernel's bf16-input / f32-accumulate math."""
    w1, b1, w2, b2, w3, b3 = params
    bf = jnp.bfloat16
    h = x.reshape(x.shape[0], -1).astype(jnp.float32)
    h = jnp.maximum(
        jnp.dot(h.astype(bf), w1.astype(bf), preferred_element_type=jnp.float32) + b1, 0.0)
    h = jnp.maximum(
        jnp.dot(h.astype(bf), w2.astype(bf), preferred_element_type=jnp.float32) + b2, 0.0)
    return jnp.dot(h.astype(bf), w3.astype(bf), preferred_element_type=jnp.float32) + b3


if __name__ == "__main__":
    key = jax.random.PRNGKey(0)
    key, kx = jax.random.split(key)

    # Small batch of MNIST-shaped inputs (NCHW), consistent with the module.
    batch = 8
    x = jax.random.normal(kx, (batch, 1, 28, 28), jnp.float32)

    params = init_params(key)

    out = mlp_forward(x, params)
    out = jax.block_until_ready(out)

    ref = mlp_reference(x, params)
    assert out.shape == (batch, D_OUT), out.shape
    assert jnp.allclose(out, ref, atol=1e-2, rtol=1e-2), "mismatch vs reference"

    print("KERNEL_OK")
</pallas_src>

<mosaic_0001>
module attributes {stable_mosaic.version = 11 : i64} {
  func.func @mlp_kernel(%arg0: i32, %arg1: memref<128x896xf32, #tpu.memory_space<vmem>>, %arg2: memref<896x256xbf16, #tpu.memory_space<vmem>>, %arg3: memref<1x256xf32, #tpu.memory_space<vmem>>, %arg4: memref<256x128xbf16, #tpu.memory_space<vmem>>, %arg5: memref<1x128xf32, #tpu.memory_space<vmem>>, %arg6: memref<128x128xbf16, #tpu.memory_space<vmem>>, %arg7: memref<1x128xf32, #tpu.memory_space<vmem>>, %arg8: memref<128x128xf32, #tpu.memory_space<vmem>>) attributes {dimension_semantics = [#tpu.dimension_semantics<parallel>], iteration_bounds = array<i64: 1>, scalar_prefetch = 0 : i64, scratch_operands = 0 : i64, tpu.core_type = #tpu.core_type<tc>, window_params = [{transform_indices = @transform_0, window_bounds = array<i64: 128, 896>}, {pipeline_mode = #tpu.pipeline_mode<synchronous>, transform_indices = @transform_1, window_bounds = array<i64: 896, 256>}, {pipeline_mode = #tpu.pipeline_mode<synchronous>, transform_indices = @transform_2, window_bounds = array<i64: 1, 256>}, {pipeline_mode = #tpu.pipeline_mode<synchronous>, transform_indices = @transform_3, window_bounds = array<i64: 256, 128>}, {pipeline_mode = #tpu.pipeline_mode<synchronous>, transform_indices = @transform_4, window_bounds = array<i64: 1, 128>}, {pipeline_mode = #tpu.pipeline_mode<synchronous>, transform_indices = @transform_5, window_bounds = array<i64: 128, 128>}, {pipeline_mode = #tpu.pipeline_mode<synchronous>, transform_indices = @transform_6, window_bounds = array<i64: 1, 128>}, {transform_indices = @transform_7, window_bounds = array<i64: 128, 128>}]} {
    %c0 = arith.constant 0 : index
    %c0_0 = arith.constant 0 : index
    %0 = vector.load %arg1[%c0, %c0_0] : memref<128x896xf32, #tpu.memory_space<vmem>>, vector<128x896xf32>
    %1 = arith.truncf %0 : vector<128x896xf32> to vector<128x896xbf16>
    %c0_1 = arith.constant 0 : index
    %c0_2 = arith.constant 0 : index
    %2 = vector.load %arg2[%c0_1, %c0_2] : memref<896x256xbf16, #tpu.memory_space<vmem>>, vector<896x256xbf16>
    %cst = arith.constant dense<0.000000e+00> : vector<128x256xf32>
    %3 = tpu.matmul %1, %2, %cst {dimension_numbers = #tpu.dot_dimension_numbers<[1], [0], [0], [1], [0, 0, 1, 1], [], []>} : vector<128x896xbf16>, vector<896x256xbf16>, vector<128x256xf32> -> vector<128x256xf32>
    %c0_3 = arith.constant 0 : index
    %c0_4 = arith.constant 0 : index
    %4 = vector.load %arg3[%c0_3, %c0_4] : memref<1x256xf32, #tpu.memory_space<vmem>>, vector<1x256xf32>
    %5 = vector.broadcast %4 : vector<1x256xf32> to vector<128x256xf32>
    %6 = arith.addf %3, %5 : vector<128x256xf32>
    %cst_5 = arith.constant 0.000000e+00 : f32
    %7 = vector.broadcast %cst_5 : f32 to vector<128x256xf32>
    %8 = arith.maximumf %6, %7 : vector<128x256xf32>
    %9 = arith.truncf %8 : vector<128x256xf32> to vector<128x256xbf16>
    %c0_6 = arith.constant 0 : index
    %c0_7 = arith.constant 0 : index
    %10 = vector.load %arg4[%c0_6, %c0_7] : memref<256x128xbf16, #tpu.memory_space<vmem>>, vector<256x128xbf16>
    %cst_8 = arith.constant dense<0.000000e+00> : vector<128x128xf32>
    %11 = tpu.matmul %9, %10, %cst_8 {dimension_numbers = #tpu.dot_dimension_numbers<[1], [0], [0], [1], [0, 0, 1, 1], [], []>} : vector<128x256xbf16>, vector<256x128xbf16>, vector<128x128xf32> -> vector<128x128xf32>
    %c0_9 = arith.constant 0 : index
    %c0_10 = arith.constant 0 : index
    %12 = vector.load %arg5[%c0_9, %c0_10] : memref<1x128xf32, #tpu.memory_space<vmem>>, vector<1x128xf32>
    %13 = vector.broadcast %12 : vector<1x128xf32> to vector<128x128xf32>
    %14 = arith.addf %11, %13 : vector<128x128xf32>
    %cst_11 = arith.constant 0.000000e+00 : f32
    %15 = vector.broadcast %cst_11 : f32 to vector<128x128xf32>
    %16 = arith.maximumf %14, %15 : vector<128x128xf32>
    %17 = arith.truncf %16 : vector<128x128xf32> to vector<128x128xbf16>
    %c0_12 = arith.constant 0 : index
    %c0_13 = arith.constant 0 : index
    %18 = vector.load %arg6[%c0_12, %c0_13] : memref<128x128xbf16, #tpu.memory_space<vmem>>, vector<128x128xbf16>
    %cst_14 = arith.constant dense<0.000000e+00> : vector<128x128xf32>
    %19 = tpu.matmul %17, %18, %cst_14 {dimension_numbers = #tpu.dot_dimension_numbers<[1], [0], [0], [1], [0, 0, 1, 1], [], []>} : vector<128x128xbf16>, vector<128x128xbf16>, vector<128x128xf32> -> vector<128x128xf32>
    %c0_15 = arith.constant 0 : index
    %c0_16 = arith.constant 0 : index
    %20 = vector.load %arg7[%c0_15, %c0_16] : memref<1x128xf32, #tpu.memory_space<vmem>>, vector<1x128xf32>
    %21 = vector.broadcast %20 : vector<1x128xf32> to vector<128x128xf32>
    %22 = arith.addf %19, %21 : vector<128x128xf32>
    %c0_17 = arith.constant 0 : index
    %c0_18 = arith.constant 0 : index
    %23 = vector.load %arg8[%c0_17, %c0_18] : memref<128x128xf32, #tpu.memory_space<vmem>>, vector<128x128xf32>
    tpu.vector_store %arg8[%c0_17, %c0_18], %22 {strides = array<i32>} : memref<128x128xf32, #tpu.memory_space<vmem>>, vector<128x128xf32>,
    return
  }
  func.func @transform_0(%arg0: i32) -> (i32, i32) {
    %c0_i32 = arith.constant 0 : i32
    %c0_i32_0 = arith.constant 0 : i32
    return %arg0, %c0_i32 : i32, i32
  }
  func.func @transform_1(%arg0: i32) -> (i32, i32) {
    %c0_i32 = arith.constant 0 : i32
    %c0_i32_0 = arith.constant 0 : i32
    %c0_i32_1 = arith.constant 0 : i32
    return %c0_i32, %c0_i32_0 : i32, i32
  }
  func.func @transform_2(%arg0: i32) -> (i32, i32) {
    %c0_i32 = arith.constant 0 : i32
    %c0_i32_0 = arith.constant 0 : i32
    %c0_i32_1 = arith.constant 0 : i32
    return %c0_i32, %c0_i32_0 : i32, i32
  }
  func.func @transform_3(%arg0: i32) -> (i32, i32) {
    %c0_i32 = arith.constant 0 : i32
    %c0_i32_0 = arith.constant 0 : i32
    %c0_i32_1 = arith.constant 0 : i32
    return %c0_i32, %c0_i32_0 : i32, i32
  }
  func.func @transform_4(%arg0: i32) -> (i32, i32) {
    %c0_i32 = arith.constant 0 : i32
    %c0_i32_0 = arith.constant 0 : i32
    %c0_i32_1 = arith.constant 0 : i32
    return %c0_i32, %c0_i32_0 : i32, i32
  }
  func.func @transform_5(%arg0: i32) -> (i32, i32) {
    %c0_i32 = arith.constant 0 : i32
    %c0_i32_0 = arith.constant 0 : i32
    %c0_i32_1 = arith.constant 0 : i32
    return %c0_i32, %c0_i32_0 : i32, i32
  }
  func.func @transform_6(%arg0: i32) -> (i32, i32) {
    %c0_i32 = arith.constant 0 : i32
    %c0_i32_0 = arith.constant 0 : i32
    %c0_i32_1 = arith.constant 0 : i32
    return %c0_i32, %c0_i32_0 : i32, i32
  }
  func.func @transform_7(%arg0: i32) -> (i32, i32) {
    %c0_i32 = arith.constant 0 : i32
    %c0_i32_0 = arith.constant 0 : i32
    return %arg0, %c0_i32 : i32, i32
  }
}

</mosaic_0001>

<llo_original>
// kernel: tpu_custom_call.1
$region0: #{tpu_custom_call.1}
  #allocation0 [shape = 'u32[]', space=smem, size = 0x4, offset = 0x4, fixed_abs, tag = 'smem constant byte address 0x4 - core index']
  #allocation1 [shape = 'u32[144,128]{1,0:T(1,128)}', space=vmem, size = 0x12000, scoped, tag = 'internal scratch']
  %s0 = inlined_call_operand.hbm [shape: f32[128,896], index: 0, kind: input, shape index: {}]
  %s1 = inlined_call_operand.hbm [shape: bf16[896,256], index: 1, kind: input, shape index: {}]
  %s2 = inlined_call_operand.vmem [shape: f32[1,256], index: 2, kind: input, shape index: {}]
  %s3 = inlined_call_operand.hbm [shape: bf16[256,128], index: 3, kind: input, shape index: {}]
  %s4 = inlined_call_operand.vmem [shape: f32[1,128], index: 4, kind: input, shape index: {}]
  %s5 = inlined_call_operand.hbm [shape: bf16[128,128], index: 5, kind: input, shape index: {}]
  %s6 = inlined_call_operand.vmem [shape: f32[1,128], index: 6, kind: input, shape index: {}]
  %s7 = inlined_call_operand.hbm [shape: f32[128,128], index: 7, kind: output, shape index: {}]
  %s8 = sld [smem:[#allocation0]]
  $region54: #{tpu_custom_call.1} parent=0
    _
  %s10 = ssub.s32 1, %s8
  %s11 = scalar_select 0, %s10, %s8
  $region1: #{tpu_custom_call.1} parent=0
    #allocation2 [shape = 'u8[458752]{0}', space=vmem, size = 0x70000, scoped, tag = 'input window, operand 0, single buffered']
    #allocation3 [shape = 's32[1]{0}', space=sflag, size = 0x4, scoped, tag = 'scoped memory for tpu_custom_call.1']
    #allocation4 [shape = 's32[1]{0}', space=sflag, size = 0x4, scoped, tag = 'scoped memory for tpu_custom_call.1']
    #allocation5 [shape = 'u8[458752]{0}', space=vmem, size = 0x70000, scoped, tag = 'input window, operand 1, single buffered']
    #allocation6 [shape = 's32[1]{0}', space=sflag, size = 0x4, scoped, tag = 'scoped memory for tpu_custom_call.1']
    #allocation7 [shape = 'u8[65536]{0}', space=vmem, size = 0x10000, scoped, tag = 'input window, operand 3, single buffered']
    #allocation8 [shape = 'u8[32768]{0}', space=vmem, size = 0x8000, scoped, tag = 'input window, operand 5, single buffered']
    #allocation9 [shape = 's32[1]{0}', space=sflag, size = 0x4, scoped, tag = 'scoped memory for tpu_custom_call.1']
    #allocation10 [shape = 'u8[65536]{0}', space=vmem, size = 0x10000, scoped, tag = 'output window, operand 0, single buffered']
    %12 = vsyncpa [#allocation3], 0
    %13 = vsyncpa [#allocation6], 0
    %14 = vsyncpa [#allocation9], 0
    %15 = vsyncpa [#allocation4], 0
    // Predicated region
    $region2: #{tpu_custom_call.1} parent=1 // pred_check
      _
    $region3: #{tpu_custom_call.1} parent=1 // pred_check_branch
      %17 = sbr.rel (0) target = $region5
    $region4: #{tpu_custom_call.1} parent=1 // pred_region
      %s19 = ssub.s32 14336, 14336
      %20 = vsyncadd [#allocation3], %s19
      %s21 = sshll.u32 [#allocation2], 4
      %s22 = int_to_ptr.vmem [resolvable:$true] %s21
      %27 = dma.hbm_to_vmem [thread:$0]  %s0, 14336, %s22, [#allocation3], 896, 896, 56
    $region5: #{tpu_custom_call.1} parent=1 // pred_fallthru
      _
    // Predicated region
    $region6: #{tpu_custom_call.1} parent=1 // pred_check
      _
    $region7: #{tpu_custom_call.1} parent=1 // pred_check_branch
      %29 = sbr.rel (0) target = $region9
    $region8: #{tpu_custom_call.1} parent=1 // pred_region
      %s31 = ssub.s32 14336, 14336
      %32 = vsyncadd [#allocation6], %s31
      %s33 = sshll.u32 [#allocation5], 4
      %s34 = int_to_ptr.vmem [resolvable:$true] %s33
      %39 = dma.hbm_to_vmem [thread:$0]  %s1, 14336, %s34, [#allocation6], 128, 128, 8
    $region9: #{tpu_custom_call.1} parent=1 // pred_fallthru
      _
    // Predicated region
    $region10: #{tpu_custom_call.1} parent=1 // pred_check
      _
    $region11: #{tpu_custom_call.1} parent=1 // pred_check_branch
      %41 = sbr.rel (0) target = $region13
    $region12: #{tpu_custom_call.1} parent=1 // pred_region
      _
    $region13: #{tpu_custom_call.1} parent=1 // pred_fallthru
      _
    // Predicated region
    $region14: #{tpu_custom_call.1} parent=1 // pred_check
      _
    $region15: #{tpu_custom_call.1} parent=1 // pred_check_branch
      %43 = sbr.rel (0) target = $region17
    $region16: #{tpu_custom_call.1} parent=1 // pred_region
      %s45 = ssub.s32 2048, 2048
      %46 = vsyncadd [#allocation6], %s45
      %s47 = sshll.u32 [#allocation7], 4
      %s48 = int_to_ptr.vmem [resolvable:$true] %s47
      %53 = dma.hbm_to_vmem [thread:$0]  %s3, 2048, %s48, [#allocation6], 64, 64, 4
    $region17: #{tpu_custom_call.1} parent=1 // pred_fallthru
      _
    // Predicated region
    $region18: #{tpu_custom_call.1} parent=1 // pred_check
      _
    $region19: #{tpu_custom_call.1} parent=1 // pred_check_branch
      %55 = sbr.rel (0) target = $region21
    $region20: #{tpu_custom_call.1} parent=1 // pred_region
      _
    $region21: #{tpu_custom_call.1} parent=1 // pred_fallthru
      _
    // Predicated region
    $region22: #{tpu_custom_call.1} parent=1 // pred_check
      _
    $region23: #{tpu_custom_call.1} parent=1 // pred_check_branch
      %57 = sbr.rel (0) target = $region25
    $region24: #{tpu_custom_call.1} parent=1 // pred_region
      %s59 = ssub.s32 1024, 1024
      %60 = vsyncadd [#allocation9], %s59
      %s61 = sshll.u32 [#allocation8], 4
      %s62 = int_to_ptr.vmem [resolvable:$true] %s61
      %67 = dma.hbm_to_vmem [thread:$0]  %s5, 1024, %s62, [#allocation9], 64, 64, 4
    $region25: #{tpu_custom_call.1} parent=1 // pred_fallthru
      _
    // Predicated region
    $region26: #{tpu_custom_call.1} parent=1 // pred_check
      _
    $region27: #{tpu_custom_call.1} parent=1 // pred_check_branch
      %69 = sbr.rel (0) target = $region29
    $region28: #{tpu_custom_call.1} parent=1 // pred_region
      _
    $region29: #{tpu_custom_call.1} parent=1 // pred_fallthru
      _
    // Predicated region
    $region30: #{tpu_custom_call.1} parent=1 // pred_check
      _
    $region31: #{tpu_custom_call.1} parent=1 // pred_check_branch
      %71 = sbr.rel (0) target = $region33
    $region32: #{tpu_custom_call.1} parent=1 // pred_region
      %72 = dma.done [#allocation3], 14336
    $region33: #{tpu_custom_call.1} parent=1 // pred_fallthru
      _
    // Predicated region
    $region34: #{tpu_custom_call.1} parent=1 // pred_check
      _
    $region35: #{tpu_custom_call.1} parent=1 // pred_check_branch
      %74 = sbr.rel (0) target = $region37
    $region36: #{tpu_custom_call.1} parent=1 // pred_region
      %75 = dma.done [#allocation6], 14336
    $region37: #{tpu_custom_call.1} parent=1 // pred_fallthru
      _
    // Predicated region
    $region38: #{tpu_custom_call.1} parent=1 // pred_check
      _
    $region39: #{tpu_custom_call.1} parent=1 // pred_check_branch
      %77 = sbr.rel (0) target = $region41
    $region40: #{tpu_custom_call.1} parent=1 // pred_region
      %78 = dma.done [#allocation6], 2048
    $region41: #{tpu_custom_call.1} parent=1 // pred_fallthru
      _
    // Predicated region
    $region42: #{tpu_custom_call.1} parent=1 // pred_check
      _
    $region43: #{tpu_custom_call.1} parent=1 // pred_check_branch
      %80 = sbr.rel (0) target = $region45
    $region44: #{tpu_custom_call.1} parent=1 // pred_region
      %81 = dma.done [#allocation9], 1024
    $region45: #{tpu_custom_call.1} parent=1 // pred_fallthru
      _
    %v83 = vld [vmem:[#allocation2] sm:$0xff]
    %v84 = vld [vmem:[#allocation2 + $0x8] sm:$0xff]
    %v85 = vld [vmem:[#allocation2 + $0x10] sm:$0xff]
    %v86 = vld [vmem:[#allocation2 + $0x18] sm:$0xff]
    %v87 = vld [vmem:[#allocation2 + $0x20] sm:$0xff]
    %v88 = vld [vmem:[#allocation2 + $0x28] sm:$0xff]
    %v89 = vld [vmem:[#allocation2 + $0x30] sm:$0xff]
    %v90 = vld [vmem:[#allocation2 + $0x38] sm:$0xff]
    %v91 = vld [vmem:[#allocation2 + $0x40] sm:$0xff]
    %v92 = vld [vmem:[#allocation2 + $0x48] sm:$0xff]
    %v93 = vld [vmem:[#allocation2 + $0x50] sm:$0xff]
    %v94 = vld [vmem:[#allocation2 + $0x58] sm:$0xff]
    %v95 = vld [vmem:[#allocation2 + $0x60] sm:$0xff]
    %v96 = vld [vmem:[#allocation2 + $0x68] sm:$0xff]
    %v97 = vld [vmem:[#allocation2 + $0x70] sm:$0xff]
    %v98 = vld [vmem:[#allocation2 + $0x78] sm:$0xff]
    %v99 = vld [vmem:[#allocation2 + $0x80] sm:$0xff]
    %v100 = vld [vmem:[#allocation2 + $0x88] sm:$0xff]
    %v101 = vld [vmem:[#allocation2 + $0x90] sm:$0xff]
    %v102 = vld [vmem:[#allocation2 + $0x98] sm:$0xff]
    %v103 = vld [vmem:[#allocation2 + $0xa0] sm:$0xff]
    %v104 = vld [vmem:[#allocation2 + $0xa8] sm:$0xff]
    %v105 = vld [vmem:[#allocation2 + $0xb0] sm:$0xff]
    %v106 = vld [vmem:[#allocation2 + $0xb8] sm:$0xff]
    %v107 = vld [vmem:[#allocation2 + $0xc0] sm:$0xff]
    %v108 = vld [vmem:[#allocation2 + $0xc8] sm:$0xff]
    %v109 = vld [vmem:[#allocation2 + $0xd0] sm:$0xff]
    %v110 = vld [vmem:[#allocation2 + $0xd8] sm:$0xff]
    %v111 = vld [vmem:[#allocation2 + $0xe0] sm:$0xff]
    %v112 = vld [vmem:[#allocation2 + $0xe8] sm:$0xff]
    %v113 = vld [vmem:[#allocation2 + $0xf0] sm:$0xff]
    %v114 = vld [vmem:[#allocation2 + $0xf8] sm:$0xff]
    %v115 = vld [vmem:[#allocation2 + $0x100] sm:$0xff]
    %v116 = vld [vmem:[#allocation2 + $0x108] sm:$0xff]
    %v117 = vld [vmem:[#allocation2 + $0x110] sm:$0xff]
    %v118 = vld [vmem:[#allocation2 + $0x118] sm:$0xff]
    %v119 = vld [vmem:[#allocation2 + $0x120] sm:$0xff]
    %v120 = vld [vmem:[#allocation2 + $0x128] sm:$0xff]
    %v121 = vld [vmem:[#allocation2 + $0x130] sm:$0xff]
    %v122 = vld [vmem:[#allocation2 + $0x138] sm:$0xff]
    %v123 = vld [vmem:[#allocation2 + $0x140] sm:$0xff]
    %v124 = vld [vmem:[#allocation2 + $0x148] sm:$0xff]
    %v125 = vld [vmem:[#allocation2 + $0x150] sm:$0xff]
    %v126 = vld [vmem:[#allocation2 + $0x158] sm:$0xff]
    %v127 = vld [vmem:[#allocation2 + $0x160] sm:$0xff]
    %v128 = vld [vmem:[#allocation2 + $0x168] sm:$0xff]
    %v129 = vld [vmem:[#allocation2 + $0x170] sm:$0xff]
    %v130 = vld [vmem:[#allocation2 + $0x178] sm:$0xff]
    %v131 = vld [vmem:[#allocation2 + $0x180] sm:$0xff]
    %v132 = vld [vmem:[#allocation2 + $0x188] sm:$0xff]
    %v133 = vld [vmem:[#allocation2 + $0x190] sm:$0xff]
    %v134 = vld [vmem:[#allocation2 + $0x198] sm:$0xff]
    %v135 = vld [vmem:[#allocation2 + $0x1a0] sm:$0xff]
    %v136 = vld [vmem:[#allocation2 + $0x1a8] sm:$0xff]
    %v137 = vld [vmem:[#allocation2 + $0x1b0] sm:$0xff]
    %v138 = vld [vmem:[#allocation2 + $0x1b8] sm:$0xff]
    %v139 = vld [vmem:[#allocation2 + $0x1c0] sm:$0xff]
    %v140 = vld [vmem:[#allocation2 + $0x1c8] sm:$0xff]
    %v141 = vld [vmem:[#allocation2 + $0x1d0] sm:$0xff]
    %v142 = vld [vmem:[#allocation2 + $0x1d8] sm:$0xff]
    %v143 = vld [vmem:[#allocation2 + $0x1e0] sm:$0xff]
    %v144 = vld [vmem:[#allocation2 + $0x1e8] sm:$0xff]
    %v145 = vld [vmem:[#allocation2 + $0x1f0] sm:$0xff]
    %v146 = vld [vmem:[#allocation2 + $0x1f8] sm:$0xff]
    %v147 = vld [vmem:[#allocation2 + $0x200] sm:$0xff]
    %v148 = vld [vmem:[#allocation2 + $0x208] sm:$0xff]
    %v149 = vld [vmem:[#allocation2 + $0x210] sm:$0xff]
    %v150 = vld [vmem:[#allocation2 + $0x218] sm:$0xff]
    %v151 = vld [vmem:[#allocation2 + $0x220] sm:$0xff]
    %v152 = vld [vmem:[#allocation2 + $0x228] sm:$0xff]
    %v153 = vld [vmem:[#allocation2 + $0x230] sm:$0xff]
    %v154 = vld [vmem:[#allocation2 + $0x238] sm:$0xff]
    %v155 = vld [vmem:[#allocation2 + $0x240] sm:$0xff]
    %v156 = vld [vmem:[#allocation2 + $0x248] sm:$0xff]
    %v157 = vld [vmem:[#allocation2 + $0x250] sm:$0xff]
    %v158 = vld [vmem:[#allocation2 + $0x258] sm:$0xff]
    %v159 = vld [vmem:[#allocation2 + $0x260] sm:$0xff]
    %v160 = vld [vmem:[#allocation2 + $0x268] sm:$0xff]
    %v161 = vld [vmem:[#allocation2 + $0x270] sm:$0xff]
    %v162 = vld [vmem:[#allocation2 + $0x278] sm:$0xff]
    %v163 = vld [vmem:[#allocation2 + $0x280] sm:$0xff]
    %v164 = vld [vmem:[#allocation2 + $0x288] sm:$0xff]
    %v165 = vld [vmem:[#allocation2 + $0x290] sm:$0xff]
    %v166 = vld [vmem:[#allocation2 + $0x298] sm:$0xff]
    %v167 = vld [vmem:[#allocation2 + $0x2a0] sm:$0xff]
    %v168 = vld [vmem:[#allocation2 + $0x2a8] sm:$0xff]
    %v169 = vld [vmem:[#allocation2 + $0x2b0] sm:$0xff]
    %v170 = vld [vmem:[#allocation2 + $0x2b8] sm:$0xff]
    %v171 = vld [vmem:[#allocation2 + $0x2c0] sm:$0xff]
    %v172 = vld [vmem:[#allocation2 + $0x2c8] sm:$0xff]
    %v173 = vld [vmem:[#allocation2 + $0x2d0] sm:$0xff]
    %v174 = vld [vmem:[#allocation2 + $0x2d8] sm:$0xff]
    %v175 = vld [vmem:[#allocation2 + $0x2e0] sm:$0xff]
    %v176 = vld [vmem:[#allocation2 + $0x2e8] sm:$0xff]
    %v177 = vld [vmem:[#allocation2 + $0x2f0] sm:$0xff]
    %v178 = vld [vmem:[#allocation2 + $0x2f8] sm:$0xff]
    %v179 = vld [vmem:[#allocation2 + $0x300] sm:$0xff]
    %v180 = vld [vmem:[#allocation2 + $0x308] sm:$0xff]
    %v181 = vld [vmem:[#allocation2 + $0x310] sm:$0xff]
    %v182 = vld [vmem:[#allocation2 + $0x318] sm:$0xff]
    %v183 = vld [vmem:[#allocation2 + $0x320] sm:$0xff]
    %v184 = vld [vmem:[#allocation2 + $0x328] sm:$0xff]
    %v185 = vld [vmem:[#allocation2 + $0x330] sm:$0xff]
    %v186 = vld [vmem:[#allocation2 + $0x338] sm:$0xff]
    %v187 = vld [vmem:[#allocation2 + $0x340] sm:$0xff]
    %v188 = vld [vmem:[#allocation2 + $0x348] sm:$0xff]
    %v189 = vld [vmem:[#allocation2 + $0x350] sm:$0xff]
    %v190 = vld [vmem:[#allocation2 + $0x358] sm:$0xff]
    %v191 = vld [vmem:[#allocation2 + $0x360] sm:$0xff]
    %v192 = vld [vmem:[#allocation2 + $0x368] sm:$0xff]
    %v193 = vld [vmem:[#allocation2 + $0x370] sm:$0xff]
    %v194 = vld [vmem:[#allocation2 + $0x378] sm:$0xff]
    %v195 = vpack.c.bf16 %v90, %v83
    %v196 = vpack.c.bf16 %v91, %v84
    %v197 = vpack.c.bf16 %v92, %v85
    %v198 = vpack.c.bf16 %v93, %v86
    %v199 = vpack.c.bf16 %v94, %v87
    %v200 = vpack.c.bf16 %v95, %v88
    %v201 = vpack.c.bf16 %v96, %v89
    %v202 = vpack.c.bf16 %v104, %v97
    %v203 = vpack.c.bf16 %v105, %v98
    %v204 = vpack.c.bf16 %v106, %v99
    %v205 = vpack.c.bf16 %v107, %v100
    %v206 = vpack.c.bf16 %v108, %v101
    %v207 = vpack.c.bf16 %v109, %v102
    %v208 = vpack.c.bf16 %v110, %v103
    %v209 = vpack.c.bf16 %v118, %v111
    %v210 = vpack.c.bf16 %v119, %v112
    %v211 = vpack.c.bf16 %v120, %v113
    %v212 = vpack.c.bf16 %v121, %v114
    %v213 = vpack.c.bf16 %v122, %v115
    %v214 = vpack.c.bf16 %v123, %v116
    %v215 = vpack.c.bf16 %v124, %v117
    %v216 = vpack.c.bf16 %v132, %v125
    %v217 = vpack.c.bf16 %v133, %v126
    %v218 = vpack.c.bf16 %v134, %v127
    %v219 = vpack.c.bf16 %v135, %v128
    %v220 = vpack.c.bf16 %v136, %v129
    %v221 = vpack.c.bf16 %v137, %v130
    %v222 = vpack.c.bf16 %v138, %v131
    %v223 = vpack.c.bf16 %v146, %v139
    %v224 = vpack.c.bf16 %v147, %v140
    %v225 = vpack.c.bf16 %v148, %v141
    %v226 = vpack.c.bf16 %v149, %v142
    %v227 = vpack.c.bf16 %v150, %v143
    %v228 = vpack.c.bf16 %v151, %v144
    %v229 = vpack.c.bf16 %v152, %v145
    %v230 = vpack.c.bf16 %v160, %v153
    %v231 = vpack.c.bf16 %v161, %v154
    %v232 = vpack.c.bf16 %v162, %v155
    %v233 = vpack.c.bf16 %v163, %v156
    %v234 = vpack.c.bf16 %v164, %v157
    %v235 = vpack.c.bf16 %v165, %v158
    %v236 = vpack.c.bf16 %v166, %v159
    %v237 = vpack.c.bf16 %v174, %v167
    %v238 = vpack.c.bf16 %v175, %v168
    %v239 = vpack.c.bf16 %v176, %v169
    %v240 = vpack.c.bf16 %v177, %v170
    %v241 = vpack.c.bf16 %v178, %v171
    %v242 = vpack.c.bf16 %v179, %v172
    %v243 = vpack.c.bf16 %v180, %v173
    %v244 = vpack.c.bf16 %v188, %v181
    %v245 = vpack.c.bf16 %v189, %v182
    %v246 = vpack.c.bf16 %v190, %v183
    %v247 = vpack.c.bf16 %v191, %v184
    %v248 = vpack.c.bf16 %v192, %v185
    %v249 = vpack.c.bf16 %v193, %v186
    %v250 = vpack.c.bf16 %v194, %v187
    %v251 = vld [vmem:[#allocation5] sm:$0xff]
    %v252 = vld [vmem:[#allocation5 + $0x8] sm:$0xff]
    %v253 = vld [vmem:[#allocation5 + $0x10] sm:$0xff]
    %v254 = vld [vmem:[#allocation5 + $0x18] sm:$0xff]
    %v255 = vld [vmem:[#allocation5 + $0x20] sm:$0xff]
    %v256 = vld [vmem:[#allocation5 + $0x28] sm:$0xff]
    %v257 = vld [vmem:[#allocation5 + $0x30] sm:$0xff]
    %v258 = vld [vmem:[#allocation5 + $0x38] sm:$0xff]
    %v259 = vld [vmem:[#allocation5 + $0x40] sm:$0xff]
    %v260 = vld [vmem:[#allocation5 + $0x48] sm:$0xff]
    %v261 = vld [vmem:[#allocation5 + $0x50] sm:$0xff]
    %v262 = vld [vmem:[#allocation5 + $0x58] sm:$0xff]
    %v263 = vld [vmem:[#allocation5 + $0x60] sm:$0xff]
    %v264 = vld [vmem:[#allocation5 + $0x68] sm:$0xff]
    %v265 = vld [vmem:[#allocation5 + $0x70] sm:$0xff]
    %v266 = vld [vmem:[#allocation5 + $0x78] sm:$0xff]
    %v267 = vld [vmem:[#allocation5 + $0x80] sm:$0xff]
    %v268 = vld [vmem:[#allocation5 + $0x88] sm:$0xff]
    %v269 = vld [vmem:[#allocation5 + $0x90] sm:$0xff]
    %v270 = vld [vmem:[#allocation5 + $0x98] sm:$0xff]
    %v271 = vld [vmem:[#allocation5 + $0xa0] sm:$0xff]
    %v272 = vld [vmem:[#allocation5 + $0xa8] sm:$0xff]
    %v273 = vld [vmem:[#allocation5 + $0xb0] sm:$0xff]
    %v274 = vld [vmem:[#allocation5 + $0xb8] sm:$0xff]
    %v275 = vld [vmem:[#allocation5 + $0xc0] sm:$0xff]
    %v276 = vld [vmem:[#allocation5 + $0xc8] sm:$0xff]
    %v277 = vld [vmem:[#allocation5 + $0xd0] sm:$0xff]
    %v278 = vld [vmem:[#allocation5 + $0xd8] sm:$0xff]
    %v279 = vld [vmem:[#allocation5 + $0xe0] sm:$0xff]
    %v280 = vld [vmem:[#allocation5 + $0xe8] sm:$0xff]
    %v281 = vld [vmem:[#allocation5 + $0xf0] sm:$0xff]
    %v282 = vld [vmem:[#allocation5 + $0xf8] sm:$0xff]
    %v283 = vld [vmem:[#allocation5 + $0x100] sm:$0xff]
    %v284 = vld [vmem:[#allocation5 + $0x108] sm:$0xff]
    %v285 = vld [vmem:[#allocation5 + $0x110] sm:$0xff]
    %v286 = vld [vmem:[#allocation5 + $0x118] sm:$0xff]
    %v287 = vld [vmem:[#allocation5 + $0x120] sm:$0xff]
    %v288 = vld [vmem:[#allocation5 + $0x128] sm:$0xff]
    %v289 = vld [vmem:[#allocation5 + $0x130] sm:$0xff]
    %v290 = vld [vmem:[#allocation5 + $0x138] sm:$0xff]
    %v291 = vld [vmem:[#allocation5 + $0x140] sm:$0xff]
    %v292 = vld [vmem:[#allocation5 + $0x148] sm:$0xff]
    %v293 = vld [vmem:[#allocation5 + $0x150] sm:$0xff]
    %v294 = vld [vmem:[#allocation5 + $0x158] sm:$0xff]
    %v295 = vld [vmem:[#allocation5 + $0x160] sm:$0xff]
    %v296 = vld [vmem:[#allocation5 + $0x168] sm:$0xff]
    %v297 = vld [vmem:[#allocation5 + $0x170] sm:$0xff]
    %v298 = vld [vmem:[#allocation5 + $0x178] sm:$0xff]
    %v299 = vld [vmem:[#allocation5 + $0x180] sm:$0xff]
    %v300 = vld [vmem:[#allocation5 + $0x188] sm:$0xff]
    %v301 = vld [vmem:[#allocation5 + $0x190] sm:$0xff]
    %v302 = vld [vmem:[#allocation5 + $0x198] sm:$0xff]
    %v303 = vld [vmem:[#allocation5 + $0x1a0] sm:$0xff]
    %v304 = vld [vmem:[#allocation5 + $0x1a8] sm:$0xff]
    %v305 = vld [vmem:[#allocation5 + $0x1b0] sm:$0xff]
    %v306 = vld [vmem:[#allocation5 + $0x1b8] sm:$0xff]
    %v307 = vld [vmem:[#allocation5 + $0x1c0] sm:$0xff]
    %v308 = vld [vmem:[#allocation5 + $0x1c8] sm:$0xff]
    %v309 = vld [vmem:[#allocation5 + $0x1d0] sm:$0xff]
    %v310 = vld [vmem:[#allocation5 + $0x1d8] sm:$0xff]
    %v311 = vld [vmem:[#allocation5 + $0x1e0] sm:$0xff]
    %v312 = vld [vmem:[#allocation5 + $0x1e8] sm:$0xff]
    %v313 = vld [vmem:[#allocation5 + $0x1f0] sm:$0xff]
    %v314 = vld [vmem:[#allocation5 + $0x1f8] sm:$0xff]
    %v315 = vld [vmem:[#allocation5 + $0x200] sm:$0xff]
    %v316 = vld [vmem:[#allocation5 + $0x208] sm:$0xff]
    %v317 = vld [vmem:[#allocation5 + $0x210] sm:$0xff]
    %v318 = vld [vmem:[#allocation5 + $0x218] sm:$0xff]
    %v319 = vld [vmem:[#allocation5 + $0x220] sm:$0xff]
    %v320 = vld [vmem:[#allocation5 + $0x228] sm:$0xff]
    %v321 = vld [vmem:[#allocation5 + $0x230] sm:$0xff]
    %v322 = vld [vmem:[#allocation5 + $0x238] sm:$0xff]
    %v323 = vld [vmem:[#allocation5 + $0x240] sm:$0xff]
    %v324 = vld [vmem:[#allocation5 + $0x248] sm:$0xff]
    %v325 = vld [vmem:[#allocation5 + $0x250] sm:$0xff]
    %v326 = vld [vmem:[#allocation5 + $0x258] sm:$0xff]
    %v327 = vld [vmem:[#allocation5 + $0x260] sm:$0xff]
    %v328 = vld [vmem:[#allocation5 + $0x268] sm:$0xff]
    %v329 = vld [vmem:[#allocation5 + $0x270] sm:$0xff]
    %v330 = vld [vmem:[#allocation5 + $0x278] sm:$0xff]
    %v331 = vld [vmem:[#allocation5 + $0x280] sm:$0xff]
    %v332 = vld [vmem:[#allocation5 + $0x288] sm:$0xff]
    %v333 = vld [vmem:[#allocation5 + $0x290] sm:$0xff]
    %v334 = vld [vmem:[#allocation5 + $0x298] sm:$0xff]
    %v335 = vld [vmem:[#allocation5 + $0x2a0] sm:$0xff]
    %v336 = vld [vmem:[#allocation5 + $0x2a8] sm:$0xff]
    %v337 = vld [vmem:[#allocation5 + $0x2b0] sm:$0xff]
    %v338 = vld [vmem:[#allocation5 + $0x2b8] sm:$0xff]
    %v339 = vld [vmem:[#allocation5 + $0x2c0] sm:$0xff]
    %v340 = vld [vmem:[#allocation5 + $0x2c8] sm:$0xff]
    %v341 = vld [vmem:[#allocation5 + $0x2d0] sm:$0xff]
    %v342 = vld [vmem:[#allocation5 + $0x2d8] sm:$0xff]
    %v343 = vld [vmem:[#allocation5 + $0x2e0] sm:$0xff]
    %v344 = vld [vmem:[#allocation5 + $0x2e8] sm:$0xff]
    %v345 = vld [vmem:[#allocation5 + $0x2f0] sm:$0xff]
    %v346 = vld [vmem:[#allocation5 + $0x2f8] sm:$0xff]
    %v347 = vld [vmem:[#allocation5 + $0x300] sm:$0xff]
    %v348 = vld [vmem:[#allocation5 + $0x308] sm:$0xff]
    %v349 = vld [vmem:[#allocation5 + $0x310] sm:$0xff]
    %v350 = vld [vmem:[#allocation5 + $0x318] sm:$0xff]
    %v351 = vld [vmem:[#allocation5 + $0x320] sm:$0xff]
    %v352 = vld [vmem:[#allocation5 + $0x328] sm:$0xff]
    %v353 = vld [vmem:[#allocation5 + $0x330] sm:$0xff]
    %v354 = vld [vmem:[#allocation5 + $0x338] sm:$0xff]
    %v355 = vld [vmem:[#allocation5 + $0x340] sm:$0xff]
    %v356 = vld [vmem:[#allocation5 + $0x348] sm:$0xff]
    %v357 = vld [vmem:[#allocation5 + $0x350] sm:$0xff]
    %v358 = vld [vmem:[#allocation5 + $0x358] sm:$0xff]
    %v359 = vld [vmem:[#allocation5 + $0x360] sm:$0xff]
    %v360 = vld [vmem:[#allocation5 + $0x368] sm:$0xff]
    %v361 = vld [vmem:[#allocation5 + $0x370] sm:$0xff]
    %v362 = vld [vmem:[#allocation5 + $0x378] sm:$0xff]
    %v363 = vld [vmem:[%s2] sm:$0x3]
    %v365 = vlaneseq
    %v366 = vshrl.u32 %v365, 7
    %v367 = vsub.s32 0, %v366
    %v368 = vrot.slane %v363, %v367
    %v369 = vlaneseq
    %v370 = vshrl.u32 %v369, 7
    %v371 = vsub.s32 1, %v370
    %v372 = vrot.slane %v363, %v371
    %v487 = vunpack.c.l.b16 %v251
    %v488 = vunpack.c.h.b16 %v251
    %v489 = vunpack.c.l.b16 %v252
    %v490 = vunpack.c.h.b16 %v252
    %v491 = vunpack.c.l.b16 %v253
    %v492 = vunpack.c.h.b16 %v253
    %v493 = vunpack.c.l.b16 %v254
    %v494 = vunpack.c.h.b16 %v254
    %v495 = vunpack.c.l.b16 %v255
    %v496 = vunpack.c.h.b16 %v255
    %v497 = vunpack.c.l.b16 %v256
    %v498 = vunpack.c.h.b16 %v256
    %v499 = vunpack.c.l.b16 %v257
    %v500 = vunpack.c.h.b16 %v257
    %v501 = vunpack.c.l.b16 %v258
    %v502 = vunpack.c.h.b16 %v258
    %v503 = vunpack.c.l.b16 %v259
    %v504 = vunpack.c.h.b16 %v259
    %v505 = vunpack.c.l.b16 %v260
    %v506 = vunpack.c.h.b16 %v260
    %v507 = vunpack.c.l.b16 %v261
    %v508 = vunpack.c.h.b16 %v261
    %v509 = vunpack.c.l.b16 %v262
    %v510 = vunpack.c.h.b16 %v262
    %v511 = vunpack.c.l.b16 %v263
    %v512 = vunpack.c.h.b16 %v263
    %v513 = vunpack.c.l.b16 %v264
    %v514 = vunpack.c.h.b16 %v264
    %v515 = vunpack.c.l.b16 %v265
    %v516 = vunpack.c.h.b16 %v265
    %v517 = vunpack.c.l.b16 %v266
    %v518 = vunpack.c.h.b16 %v266
    %v519 = vunpack.c.l.b16 %v267
    %v520 = vunpack.c.h.b16 %v267
    %v521 = vunpack.c.l.b16 %v268
    %v522 = vunpack.c.h.b16 %v268
    %v523 = vunpack.c.l.b16 %v269
    %v524 = vunpack.c.h.b16 %v269
    %v525 = vunpack.c.l.b16 %v270
    %v526 = vunpack.c.h.b16 %v270
    %v527 = vunpack.c.l.b16 %v271
    %v528 = vunpack.c.h.b16 %v271
    %v529 = vunpack.c.l.b16 %v272
    %v530 = vunpack.c.h.b16 %v272
    %v531 = vunpack.c.l.b16 %v273
    %v532 = vunpack.c.h.b16 %v273
    %v533 = vunpack.c.l.b16 %v274
    %v534 = vunpack.c.h.b16 %v274
    %v535 = vunpack.c.l.b16 %v275
    %v536 = vunpack.c.h.b16 %v275
    %v537 = vunpack.c.l.b16 %v276
    %v538 = vunpack.c.h.b16 %v276
    %v539 = vunpack.c.l.b16 %v277
    %v540 = vunpack.c.h.b16 %v277
    %v541 = vunpack.c.l.b16 %v278
    %v542 = vunpack.c.h.b16 %v278
    %v543 = vunpack.c.l.b16 %v279
    %v544 = vunpack.c.h.b16 %v279
    %v545 = vunpack.c.l.b16 %v280
    %v546 = vunpack.c.h.b16 %v280
    %v547 = vunpack.c.l.b16 %v281
    %v548 = vunpack.c.h.b16 %v281
    %v549 = vunpack.c.l.b16 %v282
    %v550 = vunpack.c.h.b16 %v282
    %v551 = vunpack.c.l.b16 %v283
    %v552 = vunpack.c.h.b16 %v283
    %v553 = vunpack.c.l.b16 %v284
    %v554 = vunpack.c.h.b16 %v284
    %v555 = vunpack.c.l.b16 %v285
    %v556 = vunpack.c.h.b16 %v285
    %v557 = vunpack.c.l.b16 %v286
    %v558 = vunpack.c.h.b16 %v286
    %v559 = vunpack.c.l.b16 %v287
    %v560 = vunpack.c.h.b16 %v287
    %v561 = vunpack.c.l.b16 %v288
    %v562 = vunpack.c.h.b16 %v288
    %v563 = vunpack.c.l.b16 %v289
    %v564 = vunpack.c.h.b16 %v289
    %v565 = vunpack.c.l.b16 %v290
    %v566 = vunpack.c.h.b16 %v290
    %v567 = vunpack.c.l.b16 %v291
    %v568 = vunpack.c.h.b16 %v291
    %v569 = vunpack.c.l.b16 %v292
    %v570 = vunpack.c.h.b16 %v292
    %v571 = vunpack.c.l.b16 %v293
    %v572 = vunpack.c.h.b16 %v293
    %v573 = vunpack.c.l.b16 %v294
    %v574 = vunpack.c.h.b16 %v294
    %v575 = vunpack.c.l.b16 %v295
    %v576 = vunpack.c.h.b16 %v295
    %v577 = vunpack.c.l.b16 %v296
    %v578 = vunpack.c.h.b16 %v296
    %v579 = vunpack.c.l.b16 %v297
    %v580 = vunpack.c.h.b16 %v297
    %v581 = vunpack.c.l.b16 %v298
    %v582 = vunpack.c.h.b16 %v298
    %v583 = vunpack.c.l.b16 %v299
    %v584 = vunpack.c.h.b16 %v299
    %v585 = vunpack.c.l.b16 %v300
    %v586 = vunpack.c.h.b16 %v300
    %v587 = vunpack.c.l.b16 %v301
    %v588 = vunpack.c.h.b16 %v301
    %v589 = vunpack.c.l.b16 %v302
    %v590 = vunpack.c.h.b16 %v302
    %v591 = vunpack.c.l.b16 %v303
    %v592 = vunpack.c.h.b16 %v303
    %v593 = vunpack.c.l.b16 %v304
    %v594 = vunpack.c.h.b16 %v304
    %v595 = vunpack.c.l.b16 %v305
    %v596 = vunpack.c.h.b16 %v305
    %v597 = vunpack.c.l.b16 %v306
    %v598 = vunpack.c.h.b16 %v306
    %v599 = vunpack.c.l.b16 %v307
    %v600 = vunpack.c.h.b16 %v307
    %v601 = vunpack.c.l.b16 %v308
    %v602 = vunpack.c.h.b16 %v308
    %v603 = vunpack.c.l.b16 %v309
    %v604 = vunpack.c.h.b16 %v309
    %v605 = vunpack.c.l.b16 %v310
    %v606 = vunpack.c.h.b16 %v310
    %v607 = vunpack.c.l.b16 %v311
    %v608 = vunpack.c.h.b16 %v311
    %v609 = vunpack.c.l.b16 %v312
    %v610 = vunpack.c.h.b16 %v312
    %v611 = vunpack.c.l.b16 %v313
    %v612 = vunpack.c.h.b16 %v313
    %v613 = vunpack.c.l.b16 %v314
    %v614 = vunpack.c.h.b16 %v314
    %v615 = vunpack.c.l.b16 %v315
    %v616 = vunpack.c.h.b16 %v315
    %v617 = vunpack.c.l.b16 %v316
    %v618 = vunpack.c.h.b16 %v316
    %v619 = vunpack.c.l.b16 %v317
    %v620 = vunpack.c.h.b16 %v317
    %v621 = vunpack.c.l.b16 %v318
    %v622 = vunpack.c.h.b16 %v318
    %v623 = vunpack.c.l.b16 %v319
    %v624 = vunpack.c.h.b16 %v319
    %v625 = vunpack.c.l.b16 %v320
    %v626 = vunpack.c.h.b16 %v320
    %v627 = vunpack.c.l.b16 %v321
    %v628 = vunpack.c.h.b16 %v321
    %v629 = vunpack.c.l.b16 %v322
    %v630 = vunpack.c.h.b16 %v322
    %v631 = vunpack.c.l.b16 %v323
    %v632 = vunpack.c.h.b16 %v323
    %v633 = vunpack.c.l.b16 %v324
    %v634 = vunpack.c.h.b16 %v324
    %v635 = vunpack.c.l.b16 %v325
    %v636 = vunpack.c.h.b16 %v325
    %v637 = vunpack.c.l.b16 %v326
    %v638 = vunpack.c.h.b16 %v326
    %v639 = vunpack.c.l.b16 %v327
    %v640 = vunpack.c.h.b16 %v327
    %v641 = vunpack.c.l.b16 %v328
    %v642 = vunpack.c.h.b16 %v328
    %v643 = vunpack.c.l.b16 %v329
    %v644 = vunpack.c.h.b16 %v329
    %v645 = vunpack.c.l.b16 %v330
    %v646 = vunpack.c.h.b16 %v330
    %v647 = vunpack.c.l.b16 %v331
    %v648 = vunpack.c.h.b16 %v331
    %v649 = vunpack.c.l.b16 %v332
    %v650 = vunpack.c.h.b16 %v332
    %v651 = vunpack.c.l.b16 %v333
    %v652 = vunpack.c.h.b16 %v333
    %v653 = vunpack.c.l.b16 %v334
    %v654 = vunpack.c.h.b16 %v334
    %v655 = vunpack.c.l.b16 %v335
    %v656 = vunpack.c.h.b16 %v335
    %v657 = vunpack.c.l.b16 %v336
    %v658 = vunpack.c.h.b16 %v336
    %v659 = vunpack.c.l.b16 %v337
    %v660 = vunpack.c.h.b16 %v337
    %v661 = vunpack.c.l.b16 %v338
    %v662 = vunpack.c.h.b16 %v338
    %v663 = vunpack.c.l.b16 %v339
    %v664 = vunpack.c.h.b16 %v339
    %v665 = vunpack.c.l.b16 %v340
    %v666 = vunpack.c.h.b16 %v340
    %v667 = vunpack.c.l.b16 %v341
    %v668 = vunpack.c.h.b16 %v341
    %v669 = vunpack.c.l.b16 %v342
    %v670 = vunpack.c.h.b16 %v342
    %v671 = vunpack.c.l.b16 %v343
    %v672 = vunpack.c.h.b16 %v343
    %v673 = vunpack.c.l.b16 %v344
    %v674 = vunpack.c.h.b16 %v344
    %v675 = vunpack.c.l.b16 %v345
    %v676 = vunpack.c.h.b16 %v345
    %v677 = vunpack.c.l.b16 %v346
    %v678 = vunpack.c.h.b16 %v346
    %v679 = vunpack.c.l.b16 %v347
    %v680 = vunpack.c.h.b16 %v347
    %v681 = vunpack.c.l.b16 %v348
    %v682 = vunpack.c.h.b16 %v348
    %v683 = vunpack.c.l.b16 %v349
    %v684 = vunpack.c.h.b16 %v349
    %v685 = vunpack.c.l.b16 %v350
    %v686 = vunpack.c.h.b16 %v350
    %v687 = vunpack.c.l.b16 %v351
    %v688 = vunpack.c.h.b16 %v351
    %v689 = vunpack.c.l.b16 %v352
    %v690 = vunpack.c.h.b16 %v352
    %v691 = vunpack.c.l.b16 %v353
    %v692 = vunpack.c.h.b16 %v353
    %v693 = vunpack.c.l.b16 %v354
    %v694 = vunpack.c.h.b16 %v354
    %v695 = vunpack.c.l.b16 %v355
    %v696 = vunpack.c.h.b16 %v355
    %v697 = vunpack.c.l.b16 %v356
    %v698 = vunpack.c.h.b16 %v356
    %v699 = vunpack.c.l.b16 %v357
    %v700 = vunpack.c.h.b16 %v357
    %v701 = vunpack.c.l.b16 %v358
    %v702 = vunpack.c.h.b16 %v358
    %v703 = vunpack.c.l.b16 %v359
    %v704 = vunpack.c.h.b16 %v359
    %v705 = vunpack.c.l.b16 %v360
    %v706 = vunpack.c.h.b16 %v360
    %v707 = vunpack.c.l.b16 %v361
    %v708 = vunpack.c.h.b16 %v361
    %v709 = vunpack.c.l.b16 %v362
    %v710 = vunpack.c.h.b16 %v362
    %v711 = vpack.c.b16 %v489, %v487
    %v712 = vpack.c.b16 %v490, %v488
    %v713 = vpack.c.b16 %v493, %v491
    %v714 = vpack.c.b16 %v494, %v492
    %v715 = vpack.c.b16 %v497, %v495
    %v716 = vpack.c.b16 %v498, %v496
    %v717 = vpack.c.b16 %v501, %v499
    %v718 = vpack.c.b16 %v502, %v500
    %v719 = vpack.c.b16 %v505, %v503
    %v720 = vpack.c.b16 %v506, %v504
    %v721 = vpack.c.b16 %v509, %v507
    %v722 = vpack.c.b16 %v510, %v508
    %v723 = vpack.c.b16 %v513, %v511
    %v724 = vpack.c.b16 %v514, %v512
    %v725 = vpack.c.b16 %v517, %v515
    %v726 = vpack.c.b16 %v518, %v516
    %v727 = vpack.c.b16 %v521, %v519
    %v728 = vpack.c.b16 %v522, %v520
    %v729 = vpack.c.b16 %v525, %v523
    %v730 = vpack.c.b16 %v526, %v524
    %v731 = vpack.c.b16 %v529, %v527
    %v732 = vpack.c.b16 %v530, %v528
    %v733 = vpack.c.b16 %v533, %v531
    %v734 = vpack.c.b16 %v534, %v532
    %v735 = vpack.c.b16 %v537, %v535
    %v736 = vpack.c.b16 %v538, %v536
    %v737 = vpack.c.b16 %v541, %v539
    %v738 = vpack.c.b16 %v542, %v540
    %v739 = vpack.c.b16 %v545, %v543
    %v740 = vpack.c.b16 %v546, %v544
    %v741 = vpack.c.b16 %v549, %v547
    %v742 = vpack.c.b16 %v550, %v548
    %v743 = vpack.c.b16 %v553, %v551
    %v744 = vpack.c.b16 %v554, %v552
    %v745 = vpack.c.b16 %v557, %v555
    %v746 = vpack.c.b16 %v558, %v556
    %v747 = vpack.c.b16 %v561, %v559
    %v748 = vpack.c.b16 %v562, %v560
    %v749 = vpack.c.b16 %v565, %v563
    %v750 = vpack.c.b16 %v566, %v564
    %v751 = vpack.c.b16 %v569, %v567
    %v752 = vpack.c.b16 %v570, %v568
    %v753 = vpack.c.b16 %v573, %v571
    %v754 = vpack.c.b16 %v574, %v572
    %v755 = vpack.c.b16 %v577, %v575
    %v756 = vpack.c.b16 %v578, %v576
    %v757 = vpack.c.b16 %v581, %v579
    %v758 = vpack.c.b16 %v582, %v580
    %v759 = vpack.c.b16 %v585, %v583
    %v760 = vpack.c.b16 %v586, %v584
    %v761 = vpack.c.b16 %v589, %v587
    %v762 = vpack.c.b16 %v590, %v588
    %v763 = vpack.c.b16 %v593, %v591
    %v764 = vpack.c.b16 %v594, %v592
    %v765 = vpack.c.b16 %v597, %v595
    %v766 = vpack.c.b16 %v598, %v596
    %v767 = vpack.c.b16 %v601, %v599
    %v768 = vpack.c.b16 %v602, %v600
    %v769 = vpack.c.b16 %v605, %v603
    %v770 = vpack.c.b16 %v606, %v604
    %v771 = vpack.c.b16 %v609, %v607
    %v772 = vpack.c.b16 %v610, %v608
    %v773 = vpack.c.b16 %v613, %v611
    %v774 = vpack.c.b16 %v614, %v612
    %v775 = vpack.c.b16 %v617, %v615
    %v776 = vpack.c.b16 %v618, %v616
    %v777 = vpack.c.b16 %v621, %v619
    %v778 = vpack.c.b16 %v622, %v620
    %v779 = vpack.c.b16 %v625, %v623
    %v780 = vpack.c.b16 %v626, %v624
    %v781 = vpack.c.b16 %v629, %v627
    %v782 = vpack.c.b16 %v630, %v628
    %v783 = vpack.c.b16 %v633, %v631
    %v784 = vpack.c.b16 %v634, %v632
    %v785 = vpack.c.b16 %v637, %v635
    %v786 = vpack.c.b16 %v638, %v636
    %v787 = vpack.c.b16 %v641, %v639
    %v788 = vpack.c.b16 %v642, %v640
    %v789 = vpack.c.b16 %v645, %v643
    %v790 = vpack.c.b16 %v646, %v644
    %v791 = vpack.c.b16 %v649, %v647
    %v792 = vpack.c.b16 %v650, %v648
    %v793 = vpack.c.b16 %v653, %v651
    %v794 = vpack.c.b16 %v654, %v652
    %v795 = vpack.c.b16 %v657, %v655
    %v796 = vpack.c.b16 %v658, %v656
    %v797 = vpack.c.b16 %v661, %v659
    %v798 = vpack.c.b16 %v662, %v660
    %v799 = vpack.c.b16 %v665, %v663
    %v800 = vpack.c.b16 %v666, %v664
    %v801 = vpack.c.b16 %v669, %v667
    %v802 = vpack.c.b16 %v670, %v668
    %v803 = vpack.c.b16 %v673, %v671
    %v804 = vpack.c.b16 %v674, %v672
    %v805 = vpack.c.b16 %v677, %v675
    %v806 = vpack.c.b16 %v678, %v676
    %v807 = vpack.c.b16 %v681, %v679
    %v808 = vpack.c.b16 %v682, %v680
    %v809 = vpack.c.b16 %v685, %v683
    %v810 = vpack.c.b16 %v686, %v684
    %v811 = vpack.c.b16 %v689, %v687
    %v812 = vpack.c.b16 %v690, %v688
    %v813 = vpack.c.b16 %v693, %v691
    %v814 = vpack.c.b16 %v694, %v692
    %v815 = vpack.c.b16 %v697, %v695
    %v816 = vpack.c.b16 %v698, %v696
    %v817 = vpack.c.b16 %v701, %v699
    %v818 = vpack.c.b16 %v702, %v700
    %v819 = vpack.c.b16 %v705, %v703
    %v820 = vpack.c.b16 %v706, %v704
    %v821 = vpack.c.b16 %v709, %v707
    %v822 = vpack.c.b16 %v710, %v708
    %935 = vmatprep.subr.bf16.mxu0 %v726
    %936 = vmatpush1.bf16.msra.mxu0 %v725
    %937 = vmatprep.subr.bf16.mxu0 %v724
    %938 = vmatpush1.bf16.msra.mxu0 %v723
    %939 = vmatprep.subr.bf16.mxu0 %v722
    %940 = vmatpush1.bf16.msra.mxu0 %v721
    %941 = vmatprep.subr.bf16.mxu0 %v720
    %942 = vmatpush1.bf16.msra.mxu0 %v719
    %943 = vmatprep.subr.bf16.mxu0 %v718
    %944 = vmatpush1.bf16.msra.mxu0 %v717
    %945 = vmatprep.subr.bf16.mxu0 %v716
    %946 = vmatpush1.bf16.msra.mxu0 %v715
    %947 = vmatprep.subr.bf16.mxu0 %v714
    %948 = vmatpush1.bf16.msra.mxu0 %v713
    %949 = vmatprep.subr.bf16.mxu0 %v712
    %950 = vmatpush1.bf16.msra.mxu0 %v711
    %951 = vmatprep.subr.bf16.mxu0 %v742
    %952 = vmatpush2.bf16.msra.mxu0 %v741
    %953 = vmatprep.subr.bf16.mxu0 %v740
    %954 = vmatpush2.bf16.msra.mxu0 %v739
    %955 = vmatprep.subr.bf16.mxu0 %v738
    %956 = vmatpush2.bf16.msra.mxu0 %v737
    %957 = vmatprep.subr.bf16.mxu0 %v736
    %958 = vmatpush2.bf16.msra.mxu0 %v735
    %959 = vmatprep.subr.bf16.mxu0 %v734
    %960 = vmatpush2.bf16.msra.mxu0 %v733
    %961 = vmatprep.subr.bf16.mxu0 %v732
    %962 = vmatpush2.bf16.msra.mxu0 %v731
    %963 = vmatprep.subr.bf16.mxu0 %v730
    %964 = vmatpush2.bf16.msra.mxu0 %v729
    %965 = vmatprep.subr.bf16.mxu0 %v728
    %966 = vmatpush2.bf16.msra.mxu0 %v727
    %967 = vmatprep.mubr.bf16.mxu0 %v196
    %968 = vmatmul.mubr.bf16.gmra.mxu0 %v195
    %v969 = vpop.f32.mrf.mxu0
    %v970 = vadd.f32 %v368, %v969
    %v971 = vpop.f32.mrf.mxu0
    %v972 = vadd.f32 %v372, %v971
    %v973 = vpop.f32.mrf.mxu0
    %v974 = vadd.f32 %v368, %v973
    %v975 = vpop.f32.mrf.mxu0
    %v976 = vadd.f32 %v372, %v975
    %977 = vmatprep.mubr.bf16.mxu0 %v203
    %978 = vmatmul.mubr.bf16.gmra.mxu0 %v202
    %v979 = vpop.f32.mrf.mxu0
    %v980 = vadd.f32 %v368, %v979
    %v981 = vpop.f32.mrf.mxu0
    %v982 = vadd.f32 %v372, %v981
    %v983 = vpop.f32.mrf.mxu0
    %v984 = vadd.f32 %v368, %v983
    %v985 = vpop.f32.mrf.mxu0
    %v986 = vadd.f32 %v372, %v985
    %987 = vmatprep.mubr.bf16.mxu0 %v210
    %988 = vmatmul.mubr.bf16.gmra.mxu0 %v209
    %v989 = vpop.f32.mrf.mxu0
    %v990 = vadd.f32 %v368, %v989
    %v991 = vpop.f32.mrf.mxu0
    %v992 = vadd.f32 %v372, %v991
    %v993 = vpop.f32.mrf.mxu0
    %v994 = vadd.f32 %v368, %v993
    %v995 = vpop.f32.mrf.mxu0
    %v996 = vadd.f32 %v372, %v995
    %997 = vmatprep.mubr.bf16.mxu0 %v217
    %998 = vmatmul.mubr.bf16.gmra.mxu0 %v216
    %v999 = vpop.f32.mrf.mxu0
    %v1000 = vadd.f32 %v368, %v999
    %v1001 = vpop.f32.mrf.mxu0
    %v1002 = vadd.f32 %v372, %v1001
    %v1003 = vpop.f32.mrf.mxu0
    %v1004 = vadd.f32 %v368, %v1003
    %v1005 = vpop.f32.mrf.mxu0
    %v1006 = vadd.f32 %v372, %v1005
    %1007 = vmatprep.mubr.bf16.mxu0 %v224
    %1008 = vmatmul.mubr.bf16.gmra.mxu0 %v223
    %v1009 = vpop.f32.mrf.mxu0
    %v1010 = vadd.f32 %v368, %v1009
    %v1011 = vpop.f32.mrf.mxu0
    %v1012 = vadd.f32 %v372, %v1011
    %v1013 = vpop.f32.mrf.mxu0
    %v1014 = vadd.f32 %v368, %v1013
    %v1015 = vpop.f32.mrf.mxu0
    %v1016 = vadd.f32 %v372, %v1015
    %1017 = vmatprep.mubr.bf16.mxu0 %v231
    %1018 = vmatmul.mubr.bf16.gmra.mxu0 %v230
    %v1019 = vpop.f32.mrf.mxu0
    %v1020 = vadd.f32 %v368, %v1019
    %v1021 = vpop.f32.mrf.mxu0
    %v1022 = vadd.f32 %v372, %v1021
    %v1023 = vpop.f32.mrf.mxu0
    %v1024 = vadd.f32 %v368, %v1023
    %v1025 = vpop.f32.mrf.mxu0
    %v1026 = vadd.f32 %v372, %v1025
    %1027 = vmatprep.mubr.bf16.mxu0 %v238
    %1028 = vmatmul.mubr.bf16.gmra.mxu0 %v237
    %v1029 = vpop.f32.mrf.mxu0
    %v1030 = vadd.f32 %v368, %v1029
    %v1031 = vpop.f32.mrf.mxu0
    %v1032 = vadd.f32 %v372, %v1031
    %v1033 = vpop.f32.mrf.mxu0
    %v1034 = vadd.f32 %v368, %v1033
    %v1035 = vpop.f32.mrf.mxu0
    %v1036 = vadd.f32 %v372, %v1035
    %1037 = vmatprep.mubr.bf16.mxu0 %v245
    %1038 = vmatmul.mubr.bf16.gmra.mxu0 %v244
    %v1039 = vpop.f32.mrf.mxu0
    %v1040 = vadd.f32 %v368, %v1039
    %v1041 = vpop.f32.mrf.mxu0
    %v1042 = vadd.f32 %v372, %v1041
    %v1043 = vpop.f32.mrf.mxu0
    %v1044 = vadd.f32 %v368, %v1043
    %v1045 = vpop.f32.mrf.mxu0
    %v1046 = vadd.f32 %v372, %v1045
    %1047 = vdwg.mxu0
    %1048 = vmatprep.subr.bf16.mxu0 %v758
    %1049 = vmatpush1.bf16.msra.mxu0 %v757
    %1050 = vmatprep.subr.bf16.mxu0 %v756
    %1051 = vmatpush1.bf16.msra.mxu0 %v755
    %1052 = vmatprep.subr.bf16.mxu0 %v754
    %1053 = vmatpush1.bf16.msra.mxu0 %v753
    %1054 = vmatprep.subr.bf16.mxu0 %v752
    %1055 = vmatpush1.bf16.msra.mxu0 %v751
    %1056 = vmatprep.subr.bf16.mxu0 %v750
    %1057 = vmatpush1.bf16.msra.mxu0 %v749
    %1058 = vmatprep.subr.bf16.mxu0 %v748
    %1059 = vmatpush1.bf16.msra.mxu0 %v747
    %1060 = vmatprep.subr.bf16.mxu0 %v746
    %1061 = vmatpush1.bf16.msra.mxu0 %v745
    %1062 = vmatprep.subr.bf16.mxu0 %v744
    %1063 = vmatpush1.bf16.msra.mxu0 %v743
    %1064 = vmatprep.subr.bf16.mxu0 %v774
    %1065 = vmatpush2.bf16.msra.mxu0 %v773
    %1066 = vmatprep.subr.bf16.mxu0 %v772
    %1067 = vmatpush2.bf16.msra.mxu0 %v771
    %1068 = vmatprep.subr.bf16.mxu0 %v770
    %1069 = vmatpush2.bf16.msra.mxu0 %v769
    %1070 = vmatprep.subr.bf16.mxu0 %v768
    %1071 = vmatpush2.bf16.msra.mxu0 %v767
    %1072 = vmatprep.subr.bf16.mxu0 %v766
    %1073 = vmatpush2.bf16.msra.mxu0 %v765
    %1074 = vmatprep.subr.bf16.mxu0 %v764
    %1075 = vmatpush2.bf16.msra.mxu0 %v763
    %1076 = vmatprep.subr.bf16.mxu0 %v762
    %1077 = vmatpush2.bf16.msra.mxu0 %v761
    %1078 = vmatprep.subr.bf16.mxu0 %v760
    %1079 = vmatpush2.bf16.msra.mxu0 %v759
    %1080 = vmatprep.mubr.bf16.mxu0 %v198
    %1081 = vmatmul.mubr.bf16.gmra.mxu0 %v197
    %v1082 = vpop.f32.mrf.mxu0
    %v1083 = vadd.f32 %v970, %v1082
    %v1084 = vpop.f32.mrf.mxu0
    %v1085 = vadd.f32 %v972, %v1084
    %v1086 = vpop.f32.mrf.mxu0
    %v1087 = vadd.f32 %v974, %v1086
    %v1088 = vpop.f32.mrf.mxu0
    %v1089 = vadd.f32 %v976, %v1088
    %1090 = vmatprep.mubr.bf16.mxu0 %v205
    %1091 = vmatmul.mubr.bf16.gmra.mxu0 %v204
    %v1092 = vpop.f32.mrf.mxu0
    %v1093 = vadd.f32 %v980, %v1092
    %v1094 = vpop.f32.mrf.mxu0
    %v1095 = vadd.f32 %v982, %v1094
    %v1096 = vpop.f32.mrf.mxu0
    %v1097 = vadd.f32 %v984, %v1096
    %v1098 = vpop.f32.mrf.mxu0
    %v1099 = vadd.f32 %v986, %v1098
    %1100 = vmatprep.mubr.bf16.mxu0 %v212
    %1101 = vmatmul.mubr.bf16.gmra.mxu0 %v211
    %v1102 = vpop.f32.mrf.mxu0
    %v1103 = vadd.f32 %v990, %v1102
    %v1104 = vpop.f32.mrf.mxu0
    %v1105 = vadd.f32 %v992, %v1104
    %v1106 = vpop.f32.mrf.mxu0
    %v1107 = vadd.f32 %v994, %v1106
    %v1108 = vpop.f32.mrf.mxu0
    %v1109 = vadd.f32 %v996, %v1108
    %1110 = vmatprep.mubr.bf16.mxu0 %v219
    %1111 = vmatmul.mubr.bf16.gmra.mxu0 %v218
    %v1112 = vpop.f32.mrf.mxu0
    %v1113 = vadd.f32 %v1000, %v1112
    %v1114 = vpop.f32.mrf.mxu0
    %v1115 = vadd.f32 %v1002, %v1114
    %v1116 = vpop.f32.mrf.mxu0
    %v1117 = vadd.f32 %v1004, %v1116
    %v1118 = vpop.f32.mrf.mxu0
    %v1119 = vadd.f32 %v1006, %v1118
    %1120 = vmatprep.mubr.bf16.mxu0 %v226
    %1121 = vmatmul.mubr.bf16.gmra.mxu0 %v225
    %v1122 = vpop.f32.mrf.mxu0
    %v1123 = vadd.f32 %v1010, %v1122
    %v1124 = vpop.f32.mrf.mxu0
    %v1125 = vadd.f32 %v1012, %v1124
    %v1126 = vpop.f32.mrf.mxu0
    %v1127 = vadd.f32 %v1014, %v1126
    %v1128 = vpop.f32.mrf.mxu0
    %v1129 = vadd.f32 %v1016, %v1128
    %1130 = vmatprep.mubr.bf16.mxu0 %v233
    %1131 = vmatmul.mubr.bf16.gmra.mxu0 %v232
    %v1132 = vpop.f32.mrf.mxu0
    %v1133 = vadd.f32 %v1020, %v1132
    %v1134 = vpop.f32.mrf.mxu0
    %v1135 = vadd.f32 %v1022, %v1134
    %v1136 = vpop.f32.mrf.mxu0
    %v1137 = vadd.f32 %v1024, %v1136
    %v1138 = vpop.f32.mrf.mxu0
    %v1139 = vadd.f32 %v1026, %v1138
    %1140 = vmatprep.mubr.bf16.mxu0 %v240
    %1141 = vmatmul.mubr.bf16.gmra.mxu0 %v239
    %v1142 = vpop.f32.mrf.mxu0
    %v1143 = vadd.f32 %v1030, %v1142
    %v1144 = vpop.f32.mrf.mxu0
    %v1145 = vadd.f32 %v1032, %v1144
    %v1146 = vpop.f32.mrf.mxu0
    %v1147 = vadd.f32 %v1034, %v1146
    %v1148 = vpop.f32.mrf.mxu0
    %v1149 = vadd.f32 %v1036, %v1148
    %1150 = vmatprep.mubr.bf16.mxu0 %v247
    %1151 = vmatmul.mubr.bf16.gmra.mxu0 %v246
    %v1152 = vpop.f32.mrf.mxu0
    %v1153 = vadd.f32 %v1040, %v1152
    %v1154 = vpop.f32.mrf.mxu0
    %v1155 = vadd.f32 %v1042, %v1154
    %v1156 = vpop.f32.mrf.mxu0
    %v1157 = vadd.f32 %v1044, %v1156
    %v1158 = vpop.f32.mrf.mxu0
    %v1159 = vadd.f32 %v1046, %v1158
    %1160 = vdwg.mxu0
    %1161 = vmatprep.subr.bf16.mxu0 %v790
    %1162 = vmatpush1.bf16.msra.mxu0 %v789
    %1163 = vmatprep.subr.bf16.mxu0 %v788
    %1164 = vmatpush1.bf16.msra.mxu0 %v787
    %1165 = vmatprep.subr.bf16.mxu0 %v786
    %1166 = vmatpush1.bf16.msra.mxu0 %v785
    %1167 = vmatprep.subr.bf16.mxu0 %v784
    %1168 = vmatpush1.bf16.msra.mxu0 %v783
    %1169 = vmatprep.subr.bf16.mxu0 %v782
    %1170 = vmatpush1.bf16.msra.mxu0 %v781
    %1171 = vmatprep.subr.bf16.mxu0 %v780
    %1172 = vmatpush1.bf16.msra.mxu0 %v779
    %1173 = vmatprep.subr.bf16.mxu0 %v778
    %1174 = vmatpush1.bf16.msra.mxu0 %v777
    %1175 = vmatprep.subr.bf16.mxu0 %v776
    %1176 = vmatpush1.bf16.msra.mxu0 %v775
    %1177 = vmatprep.subr.bf16.mxu0 %v806
    %1178 = vmatpush2.bf16.msra.mxu0 %v805
    %1179 = vmatprep.subr.bf16.mxu0 %v804
    %1180 = vmatpush2.bf16.msra.mxu0 %v803
    %1181 = vmatprep.subr.bf16.mxu0 %v802
    %1182 = vmatpush2.bf16.msra.mxu0 %v801
    %1183 = vmatprep.subr.bf16.mxu0 %v800
    %1184 = vmatpush2.bf16.msra.mxu0 %v799
    %1185 = vmatprep.subr.bf16.mxu0 %v798
    %1186 = vmatpush2.bf16.msra.mxu0 %v797
    %1187 = vmatprep.subr.bf16.mxu0 %v796
    %1188 = vmatpush2.bf16.msra.mxu0 %v795
    %1189 = vmatprep.subr.bf16.mxu0 %v794
    %1190 = vmatpush2.bf16.msra.mxu0 %v793
    %1191 = vmatprep.subr.bf16.mxu0 %v792
    %1192 = vmatpush2.bf16.msra.mxu0 %v791
    %1193 = vmatprep.mubr.bf16.mxu0 %v200
    %1194 = vmatmul.mubr.bf16.gmra.mxu0 %v199
    %v1195 = vpop.f32.mrf.mxu0
    %v1196 = vadd.f32 %v1083, %v1195
    %v1197 = vpop.f32.mrf.mxu0
    %v1198 = vadd.f32 %v1085, %v1197
    %v1199 = vpop.f32.mrf.mxu0
    %v1200 = vadd.f32 %v1087, %v1199
    %v1201 = vpop.f32.mrf.mxu0
    %v1202 = vadd.f32 %v1089, %v1201
    %1203 = vmatprep.mubr.bf16.mxu0 %v207
    %1204 = vmatmul.mubr.bf16.gmra.mxu0 %v206
    %v1205 = vpop.f32.mrf.mxu0
    %v1206 = vadd.f32 %v1093, %v1205
    %v1207 = vpop.f32.mrf.mxu0
    %v1208 = vadd.f32 %v1095, %v1207
    %v1209 = vpop.f32.mrf.mxu0
    %v1210 = vadd.f32 %v1097, %v1209
    %v1211 = vpop.f32.mrf.mxu0
    %v1212 = vadd.f32 %v1099, %v1211
    %1213 = vmatprep.mubr.bf16.mxu0 %v214
    %1214 = vmatmul.mubr.bf16.gmra.mxu0 %v213
    %v1215 = vpop.f32.mrf.mxu0
    %v1216 = vadd.f32 %v1103, %v1215
    %v1217 = vpop.f32.mrf.mxu0
    %v1218 = vadd.f32 %v1105, %v1217
    %v1219 = vpop.f32.mrf.mxu0
    %v1220 = vadd.f32 %v1107, %v1219
    %v1221 = vpop.f32.mrf.mxu0
    %v1222 = vadd.f32 %v1109, %v1221
    %1223 = vmatprep.mubr.bf16.mxu0 %v221
    %1224 = vmatmul.mubr.bf16.gmra.mxu0 %v220
    %v1225 = vpop.f32.mrf.mxu0
    %v1226 = vadd.f32 %v1113, %v1225
    %v1227 = vpop.f32.mrf.mxu0
    %v1228 = vadd.f32 %v1115, %v1227
    %v1229 = vpop.f32.mrf.mxu0
    %v1230 = vadd.f32 %v1117, %v1229
    %v1231 = vpop.f32.mrf.mxu0
    %v1232 = vadd.f32 %v1119, %v1231
    %1233 = vmatprep.mubr.bf16.mxu0 %v228
    %1234 = vmatmul.mubr.bf16.gmra.mxu0 %v227
    %v1235 = vpop.f32.mrf.mxu0
    %v1236 = vadd.f32 %v1123, %v1235
    %v1237 = vpop.f32.mrf.mxu0
    %v1238 = vadd.f32 %v1125, %v1237
    %v1239 = vpop.f32.mrf.mxu0
    %v1240 = vadd.f32 %v1127, %v1239
    %v1241 = vpop.f32.mrf.mxu0
    %v1242 = vadd.f32 %v1129, %v1241
    %1243 = vmatprep.mubr.bf16.mxu0 %v235
    %1244 = vmatmul.mubr.bf16.gmra.mxu0 %v234
    %v1245 = vpop.f32.mrf.mxu0
    %v1246 = vadd.f32 %v1133, %v1245
    %v1247 = vpop.f32.mrf.mxu0
    %v1248 = vadd.f32 %v1135, %v1247
    %v1249 = vpop.f32.mrf.mxu0
    %v1250 = vadd.f32 %v1137, %v1249
    %v1251 = vpop.f32.mrf.mxu0
    %v1252 = vadd.f32 %v1139, %v1251
    %1253 = vmatprep.mubr.bf16.mxu0 %v242
    %1254 = vmatmul.mubr.bf16.gmra.mxu0 %v241
    %v1255 = vpop.f32.mrf.mxu0
    %v1256 = vadd.f32 %v1143, %v1255
    %v1257 = vpop.f32.mrf.mxu0
    %v1258 = vadd.f32 %v1145, %v1257
    %v1259 = vpop.f32.mrf.mxu0
    %v1260 = vadd.f32 %v1147, %v1259
    %v1261 = vpop.f32.mrf.mxu0
    %v1262 = vadd.f32 %v1149, %v1261
    %1263 = vmatprep.mubr.bf16.mxu0 %v249
    %1264 = vmatmul.mubr.bf16.gmra.mxu0 %v248
    %v1265 = vpop.f32.mrf.mxu0
    %v1266 = vadd.f32 %v1153, %v1265
    %v1267 = vpop.f32.mrf.mxu0
    %v1268 = vadd.f32 %v1155, %v1267
    %v1269 = vpop.f32.mrf.mxu0
    %v1270 = vadd.f32 %v1157, %v1269
    %v1271 = vpop.f32.mrf.mxu0
    %v1272 = vadd.f32 %v1159, %v1271
    %1273 = vdwg.mxu0
    %1274 = vmatprep.subr.bf16.mxu0 %v822
    %1275 = vmatpush1.bf16.msra.mxu0 %v821
    %1276 = vmatprep.subr.bf16.mxu0 %v820
    %1277 = vmatpush1.bf16.msra.mxu0 %v819
    %1278 = vmatprep.subr.bf16.mxu0 %v818
    %1279 = vmatpush1.bf16.msra.mxu0 %v817
    %1280 = vmatprep.subr.bf16.mxu0 %v816
    %1281 = vmatpush1.bf16.msra.mxu0 %v815
    %1282 = vmatprep.subr.bf16.mxu0 %v814
    %1283 = vmatpush1.bf16.msra.mxu0 %v813
    %1284 = vmatprep.subr.bf16.mxu0 %v812
    %1285 = vmatpush1.bf16.msra.mxu0 %v811
    %1286 = vmatprep.subr.bf16.mxu0 %v810
    %1287 = vmatpush1.bf16.msra.mxu0 %v809
    %1288 = vmatprep.subr.bf16.mxu0 %v808
    %1289 = vmatpush1.bf16.msra.mxu0 %v807
    %1290 = vmatprep.subr.bf16.mxu0 0
    %1291 = vmatpush2.bf16.msra.mxu0 0
    %1292 = vmatprep.subr.bf16.mxu0 0
    %1293 = vmatpush2.bf16.msra.mxu0 0
    %1294 = vmatprep.subr.bf16.mxu0 0
    %1295 = vmatpush2.bf16.msra.mxu0 0
    %1296 = vmatprep.subr.bf16.mxu0 0
    %1297 = vmatpush2.bf16.msra.mxu0 0
    %1298 = vmatprep.subr.bf16.mxu0 0
    %1299 = vmatpush2.bf16.msra.mxu0 0
    %1300 = vmatprep.subr.bf16.mxu0 0
    %1301 = vmatpush2.bf16.msra.mxu0 0
    %1302 = vmatprep.subr.bf16.mxu0 0
    %1303 = vmatpush2.bf16.msra.mxu0 0
    %1304 = vmatprep.subr.bf16.mxu0 0
    %1305 = vmatpush2.bf16.msra.mxu0 0
    %1306 = vmatprep.mubr.bf16.mxu0 0
    %1307 = vmatmul.mubr.bf16.gmra.mxu0 %v201
    %v1308 = vpop.f32.mrf.mxu0
    %v1309 = vadd.f32 %v1196, %v1308
    %v1310 = vpop.f32.mrf.mxu0
    %v1311 = vadd.f32 %v1198, %v1310
    %v1312 = vpop.f32.mrf.mxu0
    %v1313 = vadd.f32 %v1200, %v1312
    %v1314 = vpop.f32.mrf.mxu0
    %v1315 = vadd.f32 %v1202, %v1314
    %1316 = vmatprep.mubr.bf16.mxu0 0
    %1317 = vmatmul.mubr.bf16.gmra.mxu0 %v208
    %v1318 = vpop.f32.mrf.mxu0
    %v1319 = vadd.f32 %v1206, %v1318
    %v1320 = vpop.f32.mrf.mxu0
    %v1321 = vadd.f32 %v1208, %v1320
    %v1322 = vpop.f32.mrf.mxu0
    %v1323 = vadd.f32 %v1210, %v1322
    %v1324 = vpop.f32.mrf.mxu0
    %v1325 = vadd.f32 %v1212, %v1324
    %1326 = vmatprep.mubr.bf16.mxu0 0
    %1327 = vmatmul.mubr.bf16.gmra.mxu0 %v215
    %v1328 = vpop.f32.mrf.mxu0
    %v1329 = vadd.f32 %v1216, %v1328
    %v1330 = vpop.f32.mrf.mxu0
    %v1331 = vadd.f32 %v1218, %v1330
    %v1332 = vpop.f32.mrf.mxu0
    %v1333 = vadd.f32 %v1220, %v1332
    %v1334 = vpop.f32.mrf.mxu0
    %v1335 = vadd.f32 %v1222, %v1334
    %1336 = vmatprep.mubr.bf16.mxu0 0
    %1337 = vmatmul.mubr.bf16.gmra.mxu0 %v222
    %v1338 = vpop.f32.mrf.mxu0
    %v1339 = vadd.f32 %v1226, %v1338
    %v1340 = vpop.f32.mrf.mxu0
    %v1341 = vadd.f32 %v1228, %v1340
    %v1342 = vpop.f32.mrf.mxu0
    %v1343 = vadd.f32 %v1230, %v1342
    %v1344 = vpop.f32.mrf.mxu0
    %v1345 = vadd.f32 %v1232, %v1344
    %1346 = vmatprep.mubr.bf16.mxu0 0
    %1347 = vmatmul.mubr.bf16.gmra.mxu0 %v229
    %v1348 = vpop.f32.mrf.mxu0
    %v1349 = vadd.f32 %v1236, %v1348
    %v1350 = vpop.f32.mrf.mxu0
    %v1351 = vadd.f32 %v1238, %v1350
    %v1352 = vpop.f32.mrf.mxu0
    %v1353 = vadd.f32 %v1240, %v1352
    %v1354 = vpop.f32.mrf.mxu0
    %v1355 = vadd.f32 %v1242, %v1354
    %1356 = vmatprep.mubr.bf16.mxu0 0
    %1357 = vmatmul.mubr.bf16.gmra.mxu0 %v236
    %v1358 = vpop.f32.mrf.mxu0
    %v1359 = vadd.f32 %v1246, %v1358
    %v1360 = vpop.f32.mrf.mxu0
    %v1361 = vadd.f32 %v1248, %v1360
    %v1362 = vpop.f32.mrf.mxu0
    %v1363 = vadd.f32 %v1250, %v1362
    %v1364 = vpop.f32.mrf.mxu0
    %v1365 = vadd.f32 %v1252, %v1364
    %1366 = vmatprep.mubr.bf16.mxu0 0
    %1367 = vmatmul.mubr.bf16.gmra.mxu0 %v243
    %v1368 = vpop.f32.mrf.mxu0
    %v1369 = vadd.f32 %v1256, %v1368
    %v1370 = vpop.f32.mrf.mxu0
    %v1371 = vadd.f32 %v1258, %v1370
    %v1372 = vpop.f32.mrf.mxu0
    %v1373 = vadd.f32 %v1260, %v1372
    %v1374 = vpop.f32.mrf.mxu0
    %v1375 = vadd.f32 %v1262, %v1374
    %1376 = vmatprep.mubr.bf16.mxu0 0
    %1377 = vmatmul.mubr.bf16.gmra.mxu0 %v250
    %v1378 = vpop.f32.mrf.mxu0
    %v1379 = vadd.f32 %v1266, %v1378
    %v1380 = vpop.f32.mrf.mxu0
    %v1381 = vadd.f32 %v1268, %v1380
    %v1382 = vpop.f32.mrf.mxu0
    %v1383 = vadd.f32 %v1270, %v1382
    %v1384 = vpop.f32.mrf.mxu0
    %v1385 = vadd.f32 %v1272, %v1384
    %1386 = vdwg.mxu0
    %v1387 = vmax.f32 %v1309, 0.0
    %v1388 = vmax.f32 %v1311, 0.0
    %v1389 = vmax.f32 %v1313, 0.0
    %v1390 = vmax.f32 %v1315, 0.0
    %v1391 = vmax.f32 %v1319, 0.0
    %v1392 = vmax.f32 %v1321, 0.0
    %v1393 = vmax.f32 %v1323, 0.0
    %v1394 = vmax.f32 %v1325, 0.0
    %v1395 = vmax.f32 %v1329, 0.0
    %v1396 = vmax.f32 %v1331, 0.0
    %v1397 = vmax.f32 %v1333, 0.0
    %v1398 = vmax.f32 %v1335, 0.0
    %v1399 = vmax.f32 %v1339, 0.0
    %v1400 = vmax.f32 %v1341, 0.0
    %v1401 = vmax.f32 %v1343, 0.0
    %v1402 = vmax.f32 %v1345, 0.0
    %v1403 = vmax.f32 %v1349, 0.0
    %v1404 = vmax.f32 %v1351, 0.0
    %v1405 = vmax.f32 %v1353, 0.0
    %v1406 = vmax.f32 %v1355, 0.0
    %v1407 = vmax.f32 %v1359, 0.0
    %v1408 = vmax.f32 %v1361, 0.0
    %v1409 = vmax.f32 %v1363, 0.0
    %v1410 = vmax.f32 %v1365, 0.0
    %v1411 = vmax.f32 %v1369, 0.0
    %v1412 = vmax.f32 %v1371, 0.0
    %v1413 = vmax.f32 %v1373, 0.0
    %v1414 = vmax.f32 %v1375, 0.0
    %v1415 = vmax.f32 %v1379, 0.0
    %v1416 = vmax.f32 %v1381, 0.0
    %v1417 = vmax.f32 %v1383, 0.0
    %v1418 = vmax.f32 %v1385, 0.0
    %v1419 = vpack.c.bf16 %v1389, %v1387
    %v1420 = vpack.c.bf16 %v1390, %v1388
    %v1421 = vpack.c.bf16 %v1393, %v1391
    %v1422 = vpack.c.bf16 %v1394, %v1392
    %v1423 = vpack.c.bf16 %v1397, %v1395
    %v1424 = vpack.c.bf16 %v1398, %v1396
    %v1425 = vpack.c.bf16 %v1401, %v1399
    %v1426 = vpack.c.bf16 %v1402, %v1400
    %v1427 = vpack.c.bf16 %v1405, %v1403
    %v1428 = vpack.c.bf16 %v1406, %v1404
    %v1429 = vpack.c.bf16 %v1409, %v1407
    %v1430 = vpack.c.bf16 %v1410, %v1408
    %v1431 = vpack.c.bf16 %v1413, %v1411
    %v1432 = vpack.c.bf16 %v1414, %v1412
    %v1433 = vpack.c.bf16 %v1417, %v1415
    %v1434 = vpack.c.bf16 %v1418, %v1416
    %v1435 = vld [vmem:[#allocation7] sm:$0xf]
    %v1436 = vld [vmem:[#allocation7 + $0x4] sm:$0xf]
    %v1437 = vld [vmem:[#allocation7 + $0x8] sm:$0xf]
    %v1438 = vld [vmem:[#allocation7 + $0xc] sm:$0xf]
    %v1439 = vld [vmem:[#allocation7 + $0x10] sm:$0xf]
    %v1440 = vld [vmem:[#allocation7 + $0x14] sm:$0xf]
    %v1441 = vld [vmem:[#allocation7 + $0x18] sm:$0xf]
    %v1442 = vld [vmem:[#allocation7 + $0x1c] sm:$0xf]
    %v1443 = vld [vmem:[#allocation7 + $0x20] sm:$0xf]
    %v1444 = vld [vmem:[#allocation7 + $0x24] sm:$0xf]
    %v1445 = vld [vmem:[#allocation7 + $0x28] sm:$0xf]
    %v1446 = vld [vmem:[#allocation7 + $0x2c] sm:$0xf]
    %v1447 = vld [vmem:[#allocation7 + $0x30] sm:$0xf]
    %v1448 = vld [vmem:[#allocation7 + $0x34] sm:$0xf]
    %v1449 = vld [vmem:[#allocation7 + $0x38] sm:$0xf]
    %v1450 = vld [vmem:[#allocation7 + $0x3c] sm:$0xf]
    %v1451 = vld [vmem:[#allocation7 + $0x40] sm:$0xf]
    %v1452 = vld [vmem:[#allocation7 + $0x44] sm:$0xf]
    %v1453 = vld [vmem:[#allocation7 + $0x48] sm:$0xf]
    %v1454 = vld [vmem:[#allocation7 + $0x4c] sm:$0xf]
    %v1455 = vld [vmem:[#allocation7 + $0x50] sm:$0xf]
    %v1456 = vld [vmem:[#allocation7 + $0x54] sm:$0xf]
    %v1457 = vld [vmem:[#allocation7 + $0x58] sm:$0xf]
    %v1458 = vld [vmem:[#allocation7 + $0x5c] sm:$0xf]
    %v1459 = vld [vmem:[#allocation7 + $0x60] sm:$0xf]
    %v1460 = vld [vmem:[#allocation7 + $0x64] sm:$0xf]
    %v1461 = vld [vmem:[#allocation7 + $0x68] sm:$0xf]
    %v1462 = vld [vmem:[#allocation7 + $0x6c] sm:$0xf]
    %v1463 = vld [vmem:[#allocation7 + $0x70] sm:$0xf]
    %v1464 = vld [vmem:[#allocation7 + $0x74] sm:$0xf]
    %v1465 = vld [vmem:[#allocation7 + $0x78] sm:$0xf]
    %v1466 = vld [vmem:[#allocation7 + $0x7c] sm:$0xf]
    %v1467 = vld [vmem:[%s4] sm:$0x1]
    %v1469 = vlaneseq
    %v1470 = vshrl.u32 %v1469, 7
    %v1471 = vsub.s32 0, %v1470
    %v1472 = vrot.slane %v1467, %v1471
    %v1506 = vunpack.c.l.b16 %v1435
    %v1507 = vunpack.c.l.b16 %v1436
    %v1508 = vunpack.c.l.b16 %v1437
    %v1509 = vunpack.c.l.b16 %v1438
    %v1510 = vunpack.c.l.b16 %v1439
    %v1511 = vunpack.c.l.b16 %v1440
    %v1512 = vunpack.c.l.b16 %v1441
    %v1513 = vunpack.c.l.b16 %v1442
    %v1514 = vunpack.c.l.b16 %v1443
    %v1515 = vunpack.c.l.b16 %v1444
    %v1516 = vunpack.c.l.b16 %v1445
    %v1517 = vunpack.c.l.b16 %v1446
    %v1518 = vunpack.c.l.b16 %v1447
    %v1519 = vunpack.c.l.b16 %v1448
    %v1520 = vunpack.c.l.b16 %v1449
    %v1521 = vunpack.c.l.b16 %v1450
    %v1522 = vunpack.c.l.b16 %v1451
    %v1523 = vunpack.c.l.b16 %v1452
    %v1524 = vunpack.c.l.b16 %v1453
    %v1525 = vunpack.c.l.b16 %v1454
    %v1526 = vunpack.c.l.b16 %v1455
    %v1527 = vunpack.c.l.b16 %v1456
    %v1528 = vunpack.c.l.b16 %v1457
    %v1529 = vunpack.c.l.b16 %v1458
    %v1530 = vunpack.c.l.b16 %v1459
    %v1531 = vunpack.c.l.b16 %v1460
    %v1532 = vunpack.c.l.b16 %v1461
    %v1533 = vunpack.c.l.b16 %v1462
    %v1534 = vunpack.c.l.b16 %v1463
    %v1535 = vunpack.c.l.b16 %v1464
    %v1536 = vunpack.c.l.b16 %v1465
    %v1537 = vunpack.c.l.b16 %v1466
    %v1538 = vpack.c.b16 %v1507, %v1506
    %v1539 = vpack.c.b16 %v1509, %v1508
    %v1540 = vpack.c.b16 %v1511, %v1510
    %v1541 = vpack.c.b16 %v1513, %v1512
    %v1542 = vpack.c.b16 %v1515, %v1514
    %v1543 = vpack.c.b16 %v1517, %v1516
    %v1544 = vpack.c.b16 %v1519, %v1518
    %v1545 = vpack.c.b16 %v1521, %v1520
    %v1546 = vpack.c.b16 %v1523, %v1522
    %v1547 = vpack.c.b16 %v1525, %v1524
    %v1548 = vpack.c.b16 %v1527, %v1526
    %v1549 = vpack.c.b16 %v1529, %v1528
    %v1550 = vpack.c.b16 %v1531, %v1530
    %v1551 = vpack.c.b16 %v1533, %v1532
    %v1552 = vpack.c.b16 %v1535, %v1534
    %v1553 = vpack.c.b16 %v1537, %v1536
    %1570 = vmatprep.subr.bf16.mxu0 0
    %1571 = vmatpush1.bf16.msra.mxu0 %v1545
    %1572 = vmatprep.subr.bf16.mxu0 0
    %1573 = vmatpush1.bf16.msra.mxu0 %v1544
    %1574 = vmatprep.subr.bf16.mxu0 0
    %1575 = vmatpush1.bf16.msra.mxu0 %v1543
    %1576 = vmatprep.subr.bf16.mxu0 0
    %1577 = vmatpush1.bf16.msra.mxu0 %v1542
    %1578 = vmatprep.subr.bf16.mxu0 0
    %1579 = vmatpush1.bf16.msra.mxu0 %v1541
    %1580 = vmatprep.subr.bf16.mxu0 0
    %1581 = vmatpush1.bf16.msra.mxu0 %v1540
    %1582 = vmatprep.subr.bf16.mxu0 0
    %1583 = vmatpush1.bf16.msra.mxu0 %v1539
    %1584 = vmatprep.subr.bf16.mxu0 0
    %1585 = vmatpush1.bf16.msra.mxu0 %v1538
    %1586 = vmatprep.subr.bf16.mxu0 0
    %1587 = vmatpush2.bf16.msra.mxu0 %v1553
    %1588 = vmatprep.subr.bf16.mxu0 0
    %1589 = vmatpush2.bf16.msra.mxu0 %v1552
    %1590 = vmatprep.subr.bf16.mxu0 0
    %1591 = vmatpush2.bf16.msra.mxu0 %v1551
    %1592 = vmatprep.subr.bf16.mxu0 0
    %1593 = vmatpush2.bf16.msra.mxu0 %v1550
    %1594 = vmatprep.subr.bf16.mxu0 0
    %1595 = vmatpush2.bf16.msra.mxu0 %v1549
    %1596 = vmatprep.subr.bf16.mxu0 0
    %1597 = vmatpush2.bf16.msra.mxu0 %v1548
    %1598 = vmatprep.subr.bf16.mxu0 0
    %1599 = vmatpush2.bf16.msra.mxu0 %v1547
    %1600 = vmatprep.subr.bf16.mxu0 0
    %1601 = vmatpush2.bf16.msra.mxu0 %v1546
    %1602 = vmatprep.mubr.bf16.mxu0 %v1420
    %1603 = vmatmul.mubr.bf16.gmra.mxu0 %v1419
    %v1604 = vpop.f32.mrf.mxu0
    %v1605 = vadd.f32 %v1472, %v1604
    %v1606 = vpop.f32.mrf.mxu0
    %v1607 = vpop.f32.mrf.mxu0
    %v1608 = vadd.f32 %v1472, %v1607
    %v1609 = vpop.f32.mrf.mxu0
    %1610 = vmatprep.mubr.bf16.mxu0 %v1422
    %1611 = vmatmul.mubr.bf16.gmra.mxu0 %v1421
    %v1612 = vpop.f32.mrf.mxu0
    %v1613 = vadd.f32 %v1472, %v1612
    %v1614 = vpop.f32.mrf.mxu0
    %v1615 = vpop.f32.mrf.mxu0
    %v1616 = vadd.f32 %v1472, %v1615
    %v1617 = vpop.f32.mrf.mxu0
    %1618 = vmatprep.mubr.bf16.mxu0 %v1424
    %1619 = vmatmul.mubr.bf16.gmra.mxu0 %v1423
    %v1620 = vpop.f32.mrf.mxu0
    %v1621 = vadd.f32 %v1472, %v1620
    %v1622 = vpop.f32.mrf.mxu0
    %v1623 = vpop.f32.mrf.mxu0
    %v1624 = vadd.f32 %v1472, %v1623
    %v1625 = vpop.f32.mrf.mxu0
    %1626 = vmatprep.mubr.bf16.mxu0 %v1426
    %1627 = vmatmul.mubr.bf16.gmra.mxu0 %v1425
    %v1628 = vpop.f32.mrf.mxu0
    %v1629 = vadd.f32 %v1472, %v1628
    %v1630 = vpop.f32.mrf.mxu0
    %v1631 = vpop.f32.mrf.mxu0
    %v1632 = vadd.f32 %v1472, %v1631
    %v1633 = vpop.f32.mrf.mxu0
    %1634 = vmatprep.mubr.bf16.mxu0 %v1428
    %1635 = vmatmul.mubr.bf16.gmra.mxu0 %v1427
    %v1636 = vpop.f32.mrf.mxu0
    %v1637 = vadd.f32 %v1472, %v1636
    %v1638 = vpop.f32.mrf.mxu0
    %v1639 = vpop.f32.mrf.mxu0
    %v1640 = vadd.f32 %v1472, %v1639
    %v1641 = vpop.f32.mrf.mxu0
    %1642 = vmatprep.mubr.bf16.mxu0 %v1430
    %1643 = vmatmul.mubr.bf16.gmra.mxu0 %v1429
    %v1644 = vpop.f32.mrf.mxu0
    %v1645 = vadd.f32 %v1472, %v1644
    %v1646 = vpop.f32.mrf.mxu0
    %v1647 = vpop.f32.mrf.mxu0
    %v1648 = vadd.f32 %v1472, %v1647
    %v1649 = vpop.f32.mrf.mxu0
    %1650 = vmatprep.mubr.bf16.mxu0 %v1432
    %1651 = vmatmul.mubr.bf16.gmra.mxu0 %v1431
    %v1652 = vpop.f32.mrf.mxu0
    %v1653 = vadd.f32 %v1472, %v1652
    %v1654 = vpop.f32.mrf.mxu0
    %v1655 = vpop.f32.mrf.mxu0
    %v1656 = vadd.f32 %v1472, %v1655
    %v1657 = vpop.f32.mrf.mxu0
    %1658 = vmatprep.mubr.bf16.mxu0 %v1434
    %1659 = vmatmul.mubr.bf16.gmra.mxu0 %v1433
    %v1660 = vpop.f32.mrf.mxu0
    %v1661 = vadd.f32 %v1472, %v1660
    %v1662 = vpop.f32.mrf.mxu0
    %v1663 = vpop.f32.mrf.mxu0
    %v1664 = vadd.f32 %v1472, %v1663
    %v1665 = vpop.f32.mrf.mxu0
    %1666 = vdwg.mxu0
    %v1667 = vmax.f32 %v1605, 0.0
    %v1668 = vmax.f32 %v1608, 0.0
    %v1669 = vmax.f32 %v1613, 0.0
    %v1670 = vmax.f32 %v1616, 0.0
    %v1671 = vmax.f32 %v1621, 0.0
    %v1672 = vmax.f32 %v1624, 0.0
    %v1673 = vmax.f32 %v1629, 0.0
    %v1674 = vmax.f32 %v1632, 0.0
    %v1675 = vmax.f32 %v1637, 0.0
    %v1676 = vmax.f32 %v1640, 0.0
    %v1677 = vmax.f32 %v1645, 0.0
    %v1678 = vmax.f32 %v1648, 0.0
    %v1679 = vmax.f32 %v1653, 0.0
    %v1680 = vmax.f32 %v1656, 0.0
    %v1681 = vmax.f32 %v1661, 0.0
    %v1682 = vmax.f32 %v1664, 0.0
    %v1683 = vpack.c.bf16 %v1668, %v1667
    %v1684 = vpack.c.bf16 %v1670, %v1669
    %v1685 = vpack.c.bf16 %v1672, %v1671
    %v1686 = vpack.c.bf16 %v1674, %v1673
    %v1687 = vpack.c.bf16 %v1676, %v1675
    %v1688 = vpack.c.bf16 %v1678, %v1677
    %v1689 = vpack.c.bf16 %v1680, %v1679
    %v1690 = vpack.c.bf16 %v1682, %v1681
    %v1691 = vld [vmem:[#allocation8] sm:$0xf]
    %v1692 = vld [vmem:[#allocation8 + $0x4] sm:$0xf]
    %v1693 = vld [vmem:[#allocation8 + $0x8] sm:$0xf]
    %v1694 = vld [vmem:[#allocation8 + $0xc] sm:$0xf]
    %v1695 = vld [vmem:[#allocation8 + $0x10] sm:$0xf]
    %v1696 = vld [vmem:[#allocation8 + $0x14] sm:$0xf]
    %v1697 = vld [vmem:[#allocation8 + $0x18] sm:$0xf]
    %v1698 = vld [vmem:[#allocation8 + $0x1c] sm:$0xf]
    %v1699 = vld [vmem:[#allocation8 + $0x20] sm:$0xf]
    %v1700 = vld [vmem:[#allocation8 + $0x24] sm:$0xf]
    %v1701 = vld [vmem:[#allocation8 + $0x28] sm:$0xf]
    %v1702 = vld [vmem:[#allocation8 + $0x2c] sm:$0xf]
    %v1703 = vld [vmem:[#allocation8 + $0x30] sm:$0xf]
    %v1704 = vld [vmem:[#allocation8 + $0x34] sm:$0xf]
    %v1705 = vld [vmem:[#allocation8 + $0x38] sm:$0xf]
    %v1706 = vld [vmem:[#allocation8 + $0x3c] sm:$0xf]
    %v1707 = vld [vmem:[%s6] sm:$0x1]
    %v1709 = vlaneseq
    %v1710 = vshrl.u32 %v1709, 7
    %v1711 = vsub.s32 0, %v1710
    %v1712 = vrot.slane %v1707, %v1711
    %v1730 = vunpack.c.l.b16 %v1691
    %v1731 = vunpack.c.l.b16 %v1692
    %v1732 = vunpack.c.l.b16 %v1693
    %v1733 = vunpack.c.l.b16 %v1694
    %v1734 = vunpack.c.l.b16 %v1695
    %v1735 = vunpack.c.l.b16 %v1696
    %v1736 = vunpack.c.l.b16 %v1697
    %v1737 = vunpack.c.l.b16 %v1698
    %v1738 = vunpack.c.l.b16 %v1699
    %v1739 = vunpack.c.l.b16 %v1700
    %v1740 = vunpack.c.l.b16 %v1701
    %v1741 = vunpack.c.l.b16 %v1702
    %v1742 = vunpack.c.l.b16 %v1703
    %v1743 = vunpack.c.l.b16 %v1704
    %v1744 = vunpack.c.l.b16 %v1705
    %v1745 = vunpack.c.l.b16 %v1706
    %v1746 = vpack.c.b16 %v1731, %v1730
    %v1747 = vpack.c.b16 %v1733, %v1732
    %v1748 = vpack.c.b16 %v1735, %v1734
    %v1749 = vpack.c.b16 %v1737, %v1736
    %v1750 = vpack.c.b16 %v1739, %v1738
    %v1751 = vpack.c.b16 %v1741, %v1740
    %v1752 = vpack.c.b16 %v1743, %v1742
    %v1753 = vpack.c.b16 %v1745, %v1744
    %1762 = vmatprep.subr.bf16.mxu0 0
    %1763 = vmatpush1.bf16.msra.mxu0 %v1753
    %1764 = vmatprep.subr.bf16.mxu0 0
    %1765 = vmatpush1.bf16.msra.mxu0 %v1752
    %1766 = vmatprep.subr.bf16.mxu0 0
    %1767 = vmatpush1.bf16.msra.mxu0 %v1751
    %1768 = vmatprep.subr.bf16.mxu0 0
    %1769 = vmatpush1.bf16.msra.mxu0 %v1750
    %1770 = vmatprep.subr.bf16.mxu0 0
    %1771 = vmatpush1.bf16.msra.mxu0 %v1749
    %1772 = vmatprep.subr.bf16.mxu0 0
    %1773 = vmatpush1.bf16.msra.mxu0 %v1748
    %1774 = vmatprep.subr.bf16.mxu0 0
    %1775 = vmatpush1.bf16.msra.mxu0 %v1747
    %1776 = vmatprep.subr.bf16.mxu0 0
    %1777 = vmatpush1.bf16.msra.mxu0 %v1746
    %1778 = vmatprep.subr.bf16.mxu0 0
    %1779 = vmatpush2.bf16.msra.mxu0 0
    %1780 = vmatprep.subr.bf16.mxu0 0
    %1781 = vmatpush2.bf16.msra.mxu0 0
    %1782 = vmatprep.subr.bf16.mxu0 0
    %1783 = vmatpush2.bf16.msra.mxu0 0
    %1784 = vmatprep.subr.bf16.mxu0 0
    %1785 = vmatpush2.bf16.msra.mxu0 0
    %1786 = vmatprep.subr.bf16.mxu0 0
    %1787 = vmatpush2.bf16.msra.mxu0 0
    %1788 = vmatprep.subr.bf16.mxu0 0
    %1789 = vmatpush2.bf16.msra.mxu0 0
    %1790 = vmatprep.subr.bf16.mxu0 0
    %1791 = vmatpush2.bf16.msra.mxu0 0
    %1792 = vmatprep.subr.bf16.mxu0 0
    %1793 = vmatpush2.bf16.msra.mxu0 0
    %1794 = vmatprep.mubr.bf16.mxu0 0
    %1795 = vmatmul.mubr.bf16.gmra.mxu0 %v1683
    %v1796 = vpop.f32.mrf.mxu0
    %v1797 = vadd.f32 %v1712, %v1796
    %v1798 = vpop.f32.mrf.mxu0
    %v1799 = vpop.f32.mrf.mxu0
    %v1800 = vadd.f32 %v1712, %v1799
    %v1801 = vpop.f32.mrf.mxu0
    %1802 = vmatprep.mubr.bf16.mxu0 0
    %1803 = vmatmul.mubr.bf16.gmra.mxu0 %v1684
    %v1804 = vpop.f32.mrf.mxu0
    %v1805 = vadd.f32 %v1712, %v1804
    %v1806 = vpop.f32.mrf.mxu0
    %v1807 = vpop.f32.mrf.mxu0
    %v1808 = vadd.f32 %v1712, %v1807
    %v1809 = vpop.f32.mrf.mxu0
    %1810 = vmatprep.mubr.bf16.mxu0 0
    %1811 = vmatmul.mubr.bf16.gmra.mxu0 %v1685
    %v1812 = vpop.f32.mrf.mxu0
    %v1813 = vadd.f32 %v1712, %v1812
    %v1814 = vpop.f32.mrf.mxu0
    %v1815 = vpop.f32.mrf.mxu0
    %v1816 = vadd.f32 %v1712, %v1815
    %v1817 = vpop.f32.mrf.mxu0
    %1818 = vmatprep.mubr.bf16.mxu0 0
    %1819 = vmatmul.mubr.bf16.gmra.mxu0 %v1686
    %v1820 = vpop.f32.mrf.mxu0
    %v1821 = vadd.f32 %v1712, %v1820
    %v1822 = vpop.f32.mrf.mxu0
    %v1823 = vpop.f32.mrf.mxu0
    %v1824 = vadd.f32 %v1712, %v1823
    %v1825 = vpop.f32.mrf.mxu0
    %1826 = vmatprep.mubr.bf16.mxu0 0
    %1827 = vmatmul.mubr.bf16.gmra.mxu0 %v1687
    %v1828 = vpop.f32.mrf.mxu0
    %v1829 = vadd.f32 %v1712, %v1828
    %v1830 = vpop.f32.mrf.mxu0
    %v1831 = vpop.f32.mrf.mxu0
    %v1832 = vadd.f32 %v1712, %v1831
    %v1833 = vpop.f32.mrf.mxu0
    %1834 = vmatprep.mubr.bf16.mxu0 0
    %1835 = vmatmul.mubr.bf16.gmra.mxu0 %v1688
    %v1836 = vpop.f32.mrf.mxu0
    %v1837 = vadd.f32 %v1712, %v1836
    %v1838 = vpop.f32.mrf.mxu0
    %v1839 = vpop.f32.mrf.mxu0
    %v1840 = vadd.f32 %v1712, %v1839
    %v1841 = vpop.f32.mrf.mxu0
    %1842 = vmatprep.mubr.bf16.mxu0 0
    %1843 = vmatmul.mubr.bf16.gmra.mxu0 %v1689
    %v1844 = vpop.f32.mrf.mxu0
    %v1845 = vadd.f32 %v1712, %v1844
    %v1846 = vpop.f32.mrf.mxu0
    %v1847 = vpop.f32.mrf.mxu0
    %v1848 = vadd.f32 %v1712, %v1847
    %v1849 = vpop.f32.mrf.mxu0
    %1850 = vmatprep.mubr.bf16.mxu0 0
    %1851 = vmatmul.mubr.bf16.gmra.mxu0 %v1690
    %v1852 = vpop.f32.mrf.mxu0
    %v1853 = vadd.f32 %v1712, %v1852
    %v1854 = vpop.f32.mrf.mxu0
    %v1855 = vpop.f32.mrf.mxu0
    %v1856 = vadd.f32 %v1712, %v1855
    %v1857 = vpop.f32.mrf.mxu0
    %1858 = vdwg.mxu0
    %1859 = vst [vmem:[#allocation10] sm:$0xff] %v1797
    %1860 = vst [vmem:[#allocation10 + $0x8] sm:$0xff] %v1800
    %1861 = vst [vmem:[#allocation10 + $0x10] sm:$0xff] %v1805
    %1862 = vst [vmem:[#allocation10 + $0x18] sm:$0xff] %v1808
    %1863 = vst [vmem:[#allocation10 + $0x20] sm:$0xff] %v1813
    %1864 = vst [vmem:[#allocation10 + $0x28] sm:$0xff] %v1816
    %1865 = vst [vmem:[#allocation10 + $0x30] sm:$0xff] %v1821
    %1866 = vst [vmem:[#allocation10 + $0x38] sm:$0xff] %v1824
    %1867 = vst [vmem:[#allocation10 + $0x40] sm:$0xff] %v1829
    %1868 = vst [vmem:[#allocation10 + $0x48] sm:$0xff] %v1832
    %1869 = vst [vmem:[#allocation10 + $0x50] sm:$0xff] %v1837
    %1870 = vst [vmem:[#allocation10 + $0x58] sm:$0xff] %v1840
    %1871 = vst [vmem:[#allocation10 + $0x60] sm:$0xff] %v1845
    %1872 = vst [vmem:[#allocation10 + $0x68] sm:$0xff] %v1848
    %1873 = vst [vmem:[#allocation10 + $0x70] sm:$0xff] %v1853
    %1874 = vst [vmem:[#allocation10 + $0x78] sm:$0xff] %v1856
    // Predicated region
    $region46: #{tpu_custom_call.1} parent=1 // pred_check
      _
    $region47: #{tpu_custom_call.1} parent=1 // pred_check_branch
      %1876 = sbr.rel (0) target = $region49
    $region48: #{tpu_custom_call.1} parent=1 // pred_region
      %s1878 = ssub.s32 2048, 2048
      %1879 = vsyncadd [#allocation4], %s1878
      %s1880 = sshll.u32 [#allocation10], 4
      %s1881 = int_to_ptr.vmem [resolvable:$true] %s1880
      %1886 = dma.vmem_to_hbm [thread:$0]  %s1881, 2048, %s7, [#allocation4], 128, 128, 8
    $region49: #{tpu_custom_call.1} parent=1 // pred_fallthru
      _
    // Predicated region
    $region50: #{tpu_custom_call.1} parent=1 // pred_check
      _
    $region51: #{tpu_custom_call.1} parent=1 // pred_check_branch
      %1888 = sbr.rel (0) target = $region53
    $region52: #{tpu_custom_call.1} parent=1 // pred_region
      %1889 = dma.done [#allocation4], 2048
    $region53: #{tpu_custom_call.1} parent=1 // pred_fallthru
      _
    %1890 = vsyncpa [#allocation3], 1
    %1891 = vsyncpa [#allocation6], 1
    %1892 = vsyncpa [#allocation9], 1
    %1893 = vsyncpa [#allocation4], 1

</llo_original>
